<compile_context>
chip_gen: v7x
topology: tpu7x:2x2x1
jax: 0.10.0
libtpu: 0.0.40
codegen_flags: <defaults>
</compile_context>

<pallas_src>
import functools

import jax
import jax.numpy as jnp
import numpy as np
from jax.experimental import pallas as pl
from jax.experimental.pallas import tpu as pltpu


def _adaptive_pool_matrix(in_size: int, out_size: int) -> jnp.ndarray:
    """(in_size, out_size) matrix P with P[i, o] = 1/|window_o| for i in window_o,
    matching torch.nn.AdaptiveAvgPool2d window computation along one axis."""
    mat = np.zeros((in_size, out_size), dtype=np.float32)
    for o in range(out_size):
        start = (o * in_size) // out_size
        end = -((-(o + 1) * in_size) // out_size)  # ceil((o+1)*in/out)
        mat[start:end, o] = 1.0 / float(end - start)
    return jnp.asarray(mat)


def make_pool_embed_params(w_fc, b_fc, C, H, W, pool_size=8):
    """One-time (module-init) fold of AdaptiveAvgPool2d + Flatten into the Linear
    weight.  Returns (w_bf, b2) consumed by pool_embed_forward.

    w_fc: (dim_out, C*pool^2) Linear weight;  b_fc: (dim_out,) Linear bias.
    """
    dim_out = w_fc.shape[0]
    pp = pool_size * pool_size
    chw = C * H * W
    ph = _adaptive_pool_matrix(H, pool_size)                          # (H, p)
    pw = _adaptive_pool_matrix(W, pool_size)                          # (W, p)
    pool_mat = jnp.einsum('hp,wq->hwpq', ph, pw).reshape(H * W, pp)   # (HW, pp)
    w_r = w_fc.astype(jnp.float32).reshape(dim_out, C, pp)            # (O, C, pp)
    # w_eff[c*HW + hw, o] = sum_p pool_mat[hw, p] * w_fc[o, c*pp + p]
    w_eff = jnp.einsum('hp,ocp->cho', pool_mat, w_r).reshape(chw, dim_out)
    # TODO(synk): only pool_type='avg' is folded; AdaptiveMaxPool2d ('max') cannot be
    # expressed as a matmul and is not handled here.
    w_bf = w_eff.astype(jnp.bfloat16)          # weight-only quantization to bf16
    b2 = b_fc.reshape(1, dim_out).astype(jnp.float32)
    return w_bf, b2


def pool_embed_kernel(x_ref, w_ref, b_ref, o_ref):
    # x_ref: (TB, C*H*W) f32    flattened NCHW feature map tile (cast in-kernel)
    # w_ref: (C*H*W, D)  bf16   Linear weight pre-folded with the pooling matrix
    # b_ref: (1, D)      f32    Linear bias
    # o_ref: (TB, D)     f32    L2-normalized embedding
    x = x_ref[...].astype(jnp.bfloat16)        # cast at the MXU, not in HBM
    y = jnp.dot(x, w_ref[...], preferred_element_type=jnp.float32)
    y = y + b_ref[...]
    # Normalize(power=2): x / sqrt(sum(x^2, dim=1)).  No epsilon, matching PyTorch
    # (an all-zero row yields inf/NaN there too).
    denom = jnp.sum(y * y, axis=-1, keepdims=True)
    o_ref[...] = (y * jax.lax.rsqrt(denom)).astype(o_ref.dtype)


@functools.partial(jax.jit, static_argnames=())
def pool_embed_forward(x_nchw, w_bf, b2):
    """PoolEmbed forward (avg path). x_nchw: (B, C, H, W) f32;
    (w_bf, b2) from make_pool_embed_params."""
    B, C, H, W = x_nchw.shape
    chw = C * H * W
    dim_out = w_bf.shape[1]

    x_flat = x_nchw.reshape(B, chw)            # f32 stream, no extra cast pass

    # Batch tiling: big tiles amortize the ~0.35 us per-step overhead; 256 rows of
    # f32 (4 MiB) x 2 pipeline buffers + 1 MiB weight fits v5e's 16 MiB scoped VMEM.
    TB = min(256, B)
    if B >= 16:
        # Keep >= 2 grid steps so both v7x TensorCores get work on the parallel axis.
        half = ((pl.cdiv(B, 2) + 7) // 8) * 8
        TB = min(TB, half)
    grid = (pl.cdiv(B, TB),)                   # ragged tail tile; no jnp.pad

    cost = pl.CostEstimate(
        flops=2 * B * chw * dim_out,
        transcendentals=0,
        bytes_accessed=B * chw * 4 + chw * dim_out * 2 + B * dim_out * 4,
    )

    out = pl.pallas_call(
        pool_embed_kernel,
        out_shape=jax.ShapeDtypeStruct((B, dim_out), jnp.float32),
        grid=grid,
        in_specs=[
            pl.BlockSpec((TB, chw), lambda b: (b, 0)),
            # Constant index_map -> resident; single-buffer to save VMEM.
            pl.BlockSpec((chw, dim_out), lambda b: (0, 0),
                         pipeline_mode=pl.Buffered(1)),
            pl.BlockSpec((1, dim_out), lambda b: (0, 0),
                         pipeline_mode=pl.Buffered(1)),
        ],
        out_specs=pl.BlockSpec((TB, dim_out), lambda b: (b, 0)),
        compiler_params=pltpu.CompilerParams(dimension_semantics=("parallel",)),
        cost_estimate=cost,
    )(x_flat, w_bf, b2)
    return out


if __name__ == "__main__":
    key = jax.random.PRNGKey(0)

    # PoolEmbed(layer=0, dim_out=128, pool_type='avg'):
    #   nChannels=16, pool_size=8  ->  Linear(16*8*8=1024, 128) -> L2 normalize.
    B, C, H, W = 2, 16, 16, 16
    pool_size, dim_out = 8, 128
    fan_in = C * pool_size * pool_size

    k_x, k_w, k_b = jax.random.split(key, 3)
    x = jax.random.normal(k_x, (B, C, H, W), dtype=jnp.float32)
    bound = 1.0 / float(np.sqrt(fan_in))
    w_fc = jax.random.uniform(k_w, (dim_out, fan_in), jnp.float32, minval=-bound, maxval=bound)
    b_fc = jax.random.uniform(k_b, (dim_out,), jnp.float32, minval=-bound, maxval=bound)

    # One-time fold (module init), then the fast per-call path.
    w_bf, b2 = make_pool_embed_params(w_fc, b_fc, C, H, W, pool_size=pool_size)
    out = pool_embed_forward(x, w_bf, b2)
    out = jax.block_until_ready(out)

    # Pure-JAX f32 reference of the PyTorch forward.
    # (16x16 -> 8x8 adaptive avg pool is exact uniform 2x2 average pooling.)
    pooled = x.reshape(B, C, pool_size, 2, pool_size, 2).mean(axis=(3, 5))
    y = pooled.reshape(B, -1) @ w_fc.T + b_fc
    ref = y / jnp.sqrt(jnp.sum(y * y, axis=1, keepdims=True))

    assert out.shape == (B, dim_out)
    # bf16 weight + in-kernel bf16 activation cast -> slightly looser tolerance.
    assert jnp.allclose(out, ref, atol=1e-2, rtol=1e-2), float(jnp.max(jnp.abs(out - ref)))
    print("KERNEL_OK")
</pallas_src>

<mosaic_0001>
module attributes {stable_mosaic.version = 11 : i64} {
  func.func @pool_embed_kernel(%arg0: i32, %arg1: memref<2x4096xf32, #tpu.memory_space<vmem>>, %arg2: memref<4096x128xbf16, #tpu.memory_space<vmem>>, %arg3: memref<1x128xf32, #tpu.memory_space<vmem>>, %arg4: memref<2x128xf32, #tpu.memory_space<vmem>>) attributes {dimension_semantics = [#tpu.dimension_semantics<parallel>], iteration_bounds = array<i64: 1>, scalar_prefetch = 0 : i64, scratch_operands = 0 : i64, tpu.core_type = #tpu.core_type<tc>, window_params = [{transform_indices = @transform_0, window_bounds = array<i64: 2, 4096>}, {pipeline_mode = #tpu.pipeline_mode<synchronous>, transform_indices = @transform_1, window_bounds = array<i64: 4096, 128>}, {pipeline_mode = #tpu.pipeline_mode<synchronous>, transform_indices = @transform_2, window_bounds = array<i64: 1, 128>}, {transform_indices = @transform_3, window_bounds = array<i64: 2, 128>}]} {
    %c0 = arith.constant 0 : index
    %c0_0 = arith.constant 0 : index
    %0 = vector.load %arg1[%c0, %c0_0] : memref<2x4096xf32, #tpu.memory_space<vmem>>, vector<2x4096xf32>
    %1 = arith.truncf %0 : vector<2x4096xf32> to vector<2x4096xbf16>
    %c0_1 = arith.constant 0 : index
    %c0_2 = arith.constant 0 : index
    %2 = vector.load %arg2[%c0_1, %c0_2] : memref<4096x128xbf16, #tpu.memory_space<vmem>>, vector<4096x128xbf16>
    %cst = arith.constant dense<0.000000e+00> : vector<2x128xf32>
    %3 = tpu.matmul %1, %2, %cst {dimension_numbers = #tpu.dot_dimension_numbers<[1], [0], [0], [1], [0, 0, 1, 1], [], []>} : vector<2x4096xbf16>, vector<4096x128xbf16>, vector<2x128xf32> -> vector<2x128xf32>
    %c0_3 = arith.constant 0 : index
    %c0_4 = arith.constant 0 : index
    %4 = vector.load %arg3[%c0_3, %c0_4] : memref<1x128xf32, #tpu.memory_space<vmem>>, vector<1x128xf32>
    %5 = vector.broadcast %4 : vector<1x128xf32> to vector<2x128xf32>
    %6 = arith.addf %3, %5 : vector<2x128xf32>
    %7 = arith.mulf %6, %6 : vector<2x128xf32>
    %cst_5 = arith.constant dense<0.000000e+00> : vector<2xf32>
    %8 = vector.multi_reduction <add>, %7, %cst_5 [1] : vector<2x128xf32> to vector<2xf32>
    %9 = vector.shape_cast %8 : vector<2xf32> to vector<2x1xf32>
    %10 = math.rsqrt %9 : vector<2x1xf32>
    %11 = vector.broadcast %10 : vector<2x1xf32> to vector<2x128xf32>
    %12 = arith.mulf %6, %11 : vector<2x128xf32>
    %c0_6 = arith.constant 0 : index
    %c0_7 = arith.constant 0 : index
    %13 = vector.load %arg4[%c0_6, %c0_7] : memref<2x128xf32, #tpu.memory_space<vmem>>, vector<2x128xf32>
    tpu.vector_store %arg4[%c0_6, %c0_7], %12 {strides = array<i32>} : memref<2x128xf32, #tpu.memory_space<vmem>>, vector<2x128xf32>,
    return
  }
  func.func @transform_0(%arg0: i32) -> (i32, i32) {
    %c0_i32 = arith.constant 0 : i32
    %c0_i32_0 = arith.constant 0 : i32
    return %arg0, %c0_i32 : i32, i32
  }
  func.func @transform_1(%arg0: i32) -> (i32, i32) {
    %c0_i32 = arith.constant 0 : i32
    %c0_i32_0 = arith.constant 0 : i32
    %c0_i32_1 = arith.constant 0 : i32
    return %c0_i32, %c0_i32_0 : i32, i32
  }
  func.func @transform_2(%arg0: i32) -> (i32, i32) {
    %c0_i32 = arith.constant 0 : i32
    %c0_i32_0 = arith.constant 0 : i32
    %c0_i32_1 = arith.constant 0 : i32
    return %c0_i32, %c0_i32_0 : i32, i32
  }
  func.func @transform_3(%arg0: i32) -> (i32, i32) {
    %c0_i32 = arith.constant 0 : i32
    %c0_i32_0 = arith.constant 0 : i32
    return %arg0, %c0_i32 : i32, i32
  }
}

</mosaic_0001>

<llo_original>
// kernel: pool_embed_forward.1
$region0: #{pool_embed_forward.1}
  #allocation0 [shape = 'u32[]', space=smem, size = 0x4, offset = 0x4, fixed_abs, tag = 'smem constant byte address 0x4 - core index']
  #allocation1 [shape = 'u32[144,128]{1,0:T(1,128)}', space=vmem, size = 0x12000, scoped, tag = 'internal scratch']
  %s0 = inlined_call_operand.vmem [shape: f32[2,4096], index: 0, kind: input, shape index: {}]
  %s1 = inlined_call_operand.hbm [shape: bf16[4096,128], index: 1, kind: input, shape index: {}]
  %s2 = inlined_call_operand.vmem [shape: f32[1,128], index: 2, kind: input, shape index: {}]
  %s3 = inlined_call_operand.hbm [shape: f32[2,128], index: 3, kind: output, shape index: {}]
  %s4 = sld [smem:[#allocation0]]
  $region26: #{pool_embed_forward.1} parent=0
    _
  %s6 = ssub.s32 1, %s4
  %s7 = scalar_select 0, %s6, %s4
  $region1: #{pool_embed_forward.1} parent=0
    #allocation2 [shape = 'u8[1048576]{0}', space=vmem, size = 0x100000, scoped, tag = 'input window, operand 1, single buffered']
    #allocation3 [shape = 's32[1]{0}', space=sflag, size = 0x4, scoped, tag = 'scoped memory for pool_embed_forward.1']
    #allocation4 [shape = 's32[1]{0}', space=sflag, size = 0x4, scoped, tag = 'scoped memory for pool_embed_forward.1']
    #allocation5 [shape = 'u8[1024]{0}', space=vmem, size = 0x400, scoped, tag = 'output window, operand 0, single buffered']
    %8 = vsyncpa [#allocation3], 0
    %9 = vsyncpa [#allocation4], 0
    // Predicated region
    $region2: #{pool_embed_forward.1} parent=1 // pred_check
      _
    $region3: #{pool_embed_forward.1} parent=1 // pred_check_branch
      %11 = sbr.rel (0) target = $region5
    $region4: #{pool_embed_forward.1} parent=1 // pred_region
      _
    $region5: #{pool_embed_forward.1} parent=1 // pred_fallthru
      _
    // Predicated region
    $region6: #{pool_embed_forward.1} parent=1 // pred_check
      _
    $region7: #{pool_embed_forward.1} parent=1 // pred_check_branch
      %13 = sbr.rel (0) target = $region9
    $region8: #{pool_embed_forward.1} parent=1 // pred_region
      %s15 = ssub.s32 32768, 32768
      %16 = vsyncadd [#allocation3], %s15
      %s17 = sshll.u32 [#allocation2], 4
      %s18 = int_to_ptr.vmem [resolvable:$true] %s17
      %23 = dma.hbm_to_vmem [thread:$0]  %s1, 32768, %s18, [#allocation3], 64, 64, 4
    $region9: #{pool_embed_forward.1} parent=1 // pred_fallthru
      _
    // Predicated region
    $region10: #{pool_embed_forward.1} parent=1 // pred_check
      _
    $region11: #{pool_embed_forward.1} parent=1 // pred_check_branch
      %25 = sbr.rel (0) target = $region13
    $region12: #{pool_embed_forward.1} parent=1 // pred_region
      _
    $region13: #{pool_embed_forward.1} parent=1 // pred_fallthru
      _
    // Predicated region
    $region14: #{pool_embed_forward.1} parent=1 // pred_check
      _
    $region15: #{pool_embed_forward.1} parent=1 // pred_check_branch
      %27 = sbr.rel (0) target = $region17
    $region16: #{pool_embed_forward.1} parent=1 // pred_region
      %28 = dma.done [#allocation3], 32768
    $region17: #{pool_embed_forward.1} parent=1 // pred_fallthru
      _
    %v30 = vld [vmem:[%s0] sm:$0xff]
    %v31 = vld [vmem:[%s0 + $0x8] sm:$0xff]
    %v32 = vld [vmem:[%s0 + $0x10] sm:$0xff]
    %v33 = vld [vmem:[%s0 + $0x18] sm:$0xff]
    %v34 = vld [vmem:[%s0 + $0x20] sm:$0xff]
    %v35 = vld [vmem:[%s0 + $0x28] sm:$0xff]
    %v36 = vld [vmem:[%s0 + $0x30] sm:$0xff]
    %v37 = vld [vmem:[%s0 + $0x38] sm:$0xff]
    %v46 = vcombine.high %v30, %v30
    %v48 = vunpack.c.l.s4 1983009808
    %v49 = vunpack.c.0.s8 %v48
    %v50 = vlaneseq
    %v51 = vshrl.u32 %v50, 7
    %v52 = vsub.s32 %v49, %v51
    %v53 = vrot.slane %v30, %v52
    %v55 = vunpack.c.l.s4 1983009808
    %v56 = vunpack.c.0.s8 %v55
    %v57 = vlaneseq
    %v58 = vshrl.u32 %v57, 7
    %v59 = vsub.s32 %v56, %v58
    %v60 = vrot.slane %v46, %v59
    %v61 = vcombine.high %v53, %v53
    %v62 = vcombine.high %v60, %v60
    %v63 = vcombine.high %v31, %v31
    %v65 = vunpack.c.l.s4 1983009808
    %v66 = vunpack.c.0.s8 %v65
    %v67 = vlaneseq
    %v68 = vshrl.u32 %v67, 7
    %v69 = vsub.s32 %v66, %v68
    %v70 = vrot.slane %v31, %v69
    %v72 = vunpack.c.l.s4 1983009808
    %v73 = vunpack.c.0.s8 %v72
    %v74 = vlaneseq
    %v75 = vshrl.u32 %v74, 7
    %v76 = vsub.s32 %v73, %v75
    %v77 = vrot.slane %v63, %v76
    %v78 = vcombine.high %v70, %v70
    %v79 = vcombine.high %v77, %v77
    %v80 = vcombine.high %v32, %v32
    %v82 = vunpack.c.l.s4 1983009808
    %v83 = vunpack.c.0.s8 %v82
    %v84 = vlaneseq
    %v85 = vshrl.u32 %v84, 7
    %v86 = vsub.s32 %v83, %v85
    %v87 = vrot.slane %v32, %v86
    %v89 = vunpack.c.l.s4 1983009808
    %v90 = vunpack.c.0.s8 %v89
    %v91 = vlaneseq
    %v92 = vshrl.u32 %v91, 7
    %v93 = vsub.s32 %v90, %v92
    %v94 = vrot.slane %v80, %v93
    %v95 = vcombine.high %v87, %v87
    %v96 = vcombine.high %v94, %v94
    %v97 = vcombine.high %v33, %v33
    %v99 = vunpack.c.l.s4 1983009808
    %v100 = vunpack.c.0.s8 %v99
    %v101 = vlaneseq
    %v102 = vshrl.u32 %v101, 7
    %v103 = vsub.s32 %v100, %v102
    %v104 = vrot.slane %v33, %v103
    %v106 = vunpack.c.l.s4 1983009808
    %v107 = vunpack.c.0.s8 %v106
    %v108 = vlaneseq
    %v109 = vshrl.u32 %v108, 7
    %v110 = vsub.s32 %v107, %v109
    %v111 = vrot.slane %v97, %v110
    %v112 = vcombine.high %v104, %v104
    %v113 = vcombine.high %v111, %v111
    %v114 = vcombine.high %v34, %v34
    %v116 = vunpack.c.l.s4 1983009808
    %v117 = vunpack.c.0.s8 %v116
    %v118 = vlaneseq
    %v119 = vshrl.u32 %v118, 7
    %v120 = vsub.s32 %v117, %v119
    %v121 = vrot.slane %v34, %v120
    %v123 = vunpack.c.l.s4 1983009808
    %v124 = vunpack.c.0.s8 %v123
    %v125 = vlaneseq
    %v126 = vshrl.u32 %v125, 7
    %v127 = vsub.s32 %v124, %v126
    %v128 = vrot.slane %v114, %v127
    %v129 = vcombine.high %v121, %v121
    %v130 = vcombine.high %v128, %v128
    %v131 = vcombine.high %v35, %v35
    %v133 = vunpack.c.l.s4 1983009808
    %v134 = vunpack.c.0.s8 %v133
    %v135 = vlaneseq
    %v136 = vshrl.u32 %v135, 7
    %v137 = vsub.s32 %v134, %v136
    %v138 = vrot.slane %v35, %v137
    %v140 = vunpack.c.l.s4 1983009808
    %v141 = vunpack.c.0.s8 %v140
    %v142 = vlaneseq
    %v143 = vshrl.u32 %v142, 7
    %v144 = vsub.s32 %v141, %v143
    %v145 = vrot.slane %v131, %v144
    %v146 = vcombine.high %v138, %v138
    %v147 = vcombine.high %v145, %v145
    %v148 = vcombine.high %v36, %v36
    %v150 = vunpack.c.l.s4 1983009808
    %v151 = vunpack.c.0.s8 %v150
    %v152 = vlaneseq
    %v153 = vshrl.u32 %v152, 7
    %v154 = vsub.s32 %v151, %v153
    %v155 = vrot.slane %v36, %v154
    %v157 = vunpack.c.l.s4 1983009808
    %v158 = vunpack.c.0.s8 %v157
    %v159 = vlaneseq
    %v160 = vshrl.u32 %v159, 7
    %v161 = vsub.s32 %v158, %v160
    %v162 = vrot.slane %v148, %v161
    %v163 = vcombine.high %v155, %v155
    %v164 = vcombine.high %v162, %v162
    %v165 = vcombine.high %v37, %v37
    %v167 = vunpack.c.l.s4 1983009808
    %v168 = vunpack.c.0.s8 %v167
    %v169 = vlaneseq
    %v170 = vshrl.u32 %v169, 7
    %v171 = vsub.s32 %v168, %v170
    %v172 = vrot.slane %v37, %v171
    %v174 = vunpack.c.l.s4 1983009808
    %v175 = vunpack.c.0.s8 %v174
    %v176 = vlaneseq
    %v177 = vshrl.u32 %v176, 7
    %v178 = vsub.s32 %v175, %v177
    %v179 = vrot.slane %v165, %v178
    %v180 = vcombine.high %v172, %v172
    %v181 = vcombine.high %v179, %v179
    %v214 = vpack.c.bf16 %v53, %v53
    %v215 = vpack.c.bf16 %v61, %v61
    %v216 = vpack.c.bf16 %v60, %v60
    %v217 = vpack.c.bf16 %v62, %v62
    %v218 = vpack.c.bf16 %v70, %v70
    %v219 = vpack.c.bf16 %v78, %v78
    %v220 = vpack.c.bf16 %v77, %v77
    %v221 = vpack.c.bf16 %v79, %v79
    %v222 = vpack.c.bf16 %v87, %v87
    %v223 = vpack.c.bf16 %v95, %v95
    %v224 = vpack.c.bf16 %v94, %v94
    %v225 = vpack.c.bf16 %v96, %v96
    %v226 = vpack.c.bf16 %v104, %v104
    %v227 = vpack.c.bf16 %v112, %v112
    %v228 = vpack.c.bf16 %v111, %v111
    %v229 = vpack.c.bf16 %v113, %v113
    %v230 = vpack.c.bf16 %v121, %v121
    %v231 = vpack.c.bf16 %v129, %v129
    %v232 = vpack.c.bf16 %v128, %v128
    %v233 = vpack.c.bf16 %v130, %v130
    %v234 = vpack.c.bf16 %v138, %v138
    %v235 = vpack.c.bf16 %v146, %v146
    %v236 = vpack.c.bf16 %v145, %v145
    %v237 = vpack.c.bf16 %v147, %v147
    %v238 = vpack.c.bf16 %v155, %v155
    %v239 = vpack.c.bf16 %v163, %v163
    %v240 = vpack.c.bf16 %v162, %v162
    %v241 = vpack.c.bf16 %v164, %v164
    %v242 = vpack.c.bf16 %v172, %v172
    %v243 = vpack.c.bf16 %v180, %v180
    %v244 = vpack.c.bf16 %v179, %v179
    %v245 = vpack.c.bf16 %v181, %v181
    %v246 = vld [vmem:[#allocation2] sm:$0xf]
    %v247 = vld [vmem:[#allocation2 + $0x4] sm:$0xf]
    %v248 = vld [vmem:[#allocation2 + $0x8] sm:$0xf]
    %v249 = vld [vmem:[#allocation2 + $0xc] sm:$0xf]
    %v250 = vld [vmem:[#allocation2 + $0x10] sm:$0xf]
    %v251 = vld [vmem:[#allocation2 + $0x14] sm:$0xf]
    %v252 = vld [vmem:[#allocation2 + $0x18] sm:$0xf]
    %v253 = vld [vmem:[#allocation2 + $0x1c] sm:$0xf]
    %v254 = vld [vmem:[#allocation2 + $0x20] sm:$0xf]
    %v255 = vld [vmem:[#allocation2 + $0x24] sm:$0xf]
    %v256 = vld [vmem:[#allocation2 + $0x28] sm:$0xf]
    %v257 = vld [vmem:[#allocation2 + $0x2c] sm:$0xf]
    %v258 = vld [vmem:[#allocation2 + $0x30] sm:$0xf]
    %v259 = vld [vmem:[#allocation2 + $0x34] sm:$0xf]
    %v260 = vld [vmem:[#allocation2 + $0x38] sm:$0xf]
    %v261 = vld [vmem:[#allocation2 + $0x3c] sm:$0xf]
    %v262 = vld [vmem:[#allocation2 + $0x40] sm:$0xf]
    %v263 = vld [vmem:[#allocation2 + $0x44] sm:$0xf]
    %v264 = vld [vmem:[#allocation2 + $0x48] sm:$0xf]
    %v265 = vld [vmem:[#allocation2 + $0x4c] sm:$0xf]
    %v266 = vld [vmem:[#allocation2 + $0x50] sm:$0xf]
    %v267 = vld [vmem:[#allocation2 + $0x54] sm:$0xf]
    %v268 = vld [vmem:[#allocation2 + $0x58] sm:$0xf]
    %v269 = vld [vmem:[#allocation2 + $0x5c] sm:$0xf]
    %v270 = vld [vmem:[#allocation2 + $0x60] sm:$0xf]
    %v271 = vld [vmem:[#allocation2 + $0x64] sm:$0xf]
    %v272 = vld [vmem:[#allocation2 + $0x68] sm:$0xf]
    %v273 = vld [vmem:[#allocation2 + $0x6c] sm:$0xf]
    %v274 = vld [vmem:[#allocation2 + $0x70] sm:$0xf]
    %v275 = vld [vmem:[#allocation2 + $0x74] sm:$0xf]
    %v276 = vld [vmem:[#allocation2 + $0x78] sm:$0xf]
    %v277 = vld [vmem:[#allocation2 + $0x7c] sm:$0xf]
    %v278 = vld [vmem:[#allocation2 + $0x80] sm:$0xf]
    %v279 = vld [vmem:[#allocation2 + $0x84] sm:$0xf]
    %v280 = vld [vmem:[#allocation2 + $0x88] sm:$0xf]
    %v281 = vld [vmem:[#allocation2 + $0x8c] sm:$0xf]
    %v282 = vld [vmem:[#allocation2 + $0x90] sm:$0xf]
    %v283 = vld [vmem:[#allocation2 + $0x94] sm:$0xf]
    %v284 = vld [vmem:[#allocation2 + $0x98] sm:$0xf]
    %v285 = vld [vmem:[#allocation2 + $0x9c] sm:$0xf]
    %v286 = vld [vmem:[#allocation2 + $0xa0] sm:$0xf]
    %v287 = vld [vmem:[#allocation2 + $0xa4] sm:$0xf]
    %v288 = vld [vmem:[#allocation2 + $0xa8] sm:$0xf]
    %v289 = vld [vmem:[#allocation2 + $0xac] sm:$0xf]
    %v290 = vld [vmem:[#allocation2 + $0xb0] sm:$0xf]
    %v291 = vld [vmem:[#allocation2 + $0xb4] sm:$0xf]
    %v292 = vld [vmem:[#allocation2 + $0xb8] sm:$0xf]
    %v293 = vld [vmem:[#allocation2 + $0xbc] sm:$0xf]
    %v294 = vld [vmem:[#allocation2 + $0xc0] sm:$0xf]
    %v295 = vld [vmem:[#allocation2 + $0xc4] sm:$0xf]
    %v296 = vld [vmem:[#allocation2 + $0xc8] sm:$0xf]
    %v297 = vld [vmem:[#allocation2 + $0xcc] sm:$0xf]
    %v298 = vld [vmem:[#allocation2 + $0xd0] sm:$0xf]
    %v299 = vld [vmem:[#allocation2 + $0xd4] sm:$0xf]
    %v300 = vld [vmem:[#allocation2 + $0xd8] sm:$0xf]
    %v301 = vld [vmem:[#allocation2 + $0xdc] sm:$0xf]
    %v302 = vld [vmem:[#allocation2 + $0xe0] sm:$0xf]
    %v303 = vld [vmem:[#allocation2 + $0xe4] sm:$0xf]
    %v304 = vld [vmem:[#allocation2 + $0xe8] sm:$0xf]
    %v305 = vld [vmem:[#allocation2 + $0xec] sm:$0xf]
    %v306 = vld [vmem:[#allocation2 + $0xf0] sm:$0xf]
    %v307 = vld [vmem:[#allocation2 + $0xf4] sm:$0xf]
    %v308 = vld [vmem:[#allocation2 + $0xf8] sm:$0xf]
    %v309 = vld [vmem:[#allocation2 + $0xfc] sm:$0xf]
    %v310 = vld [vmem:[#allocation2 + $0x100] sm:$0xf]
    %v311 = vld [vmem:[#allocation2 + $0x104] sm:$0xf]
    %v312 = vld [vmem:[#allocation2 + $0x108] sm:$0xf]
    %v313 = vld [vmem:[#allocation2 + $0x10c] sm:$0xf]
    %v314 = vld [vmem:[#allocation2 + $0x110] sm:$0xf]
    %v315 = vld [vmem:[#allocation2 + $0x114] sm:$0xf]
    %v316 = vld [vmem:[#allocation2 + $0x118] sm:$0xf]
    %v317 = vld [vmem:[#allocation2 + $0x11c] sm:$0xf]
    %v318 = vld [vmem:[#allocation2 + $0x120] sm:$0xf]
    %v319 = vld [vmem:[#allocation2 + $0x124] sm:$0xf]
    %v320 = vld [vmem:[#allocation2 + $0x128] sm:$0xf]
    %v321 = vld [vmem:[#allocation2 + $0x12c] sm:$0xf]
    %v322 = vld [vmem:[#allocation2 + $0x130] sm:$0xf]
    %v323 = vld [vmem:[#allocation2 + $0x134] sm:$0xf]
    %v324 = vld [vmem:[#allocation2 + $0x138] sm:$0xf]
    %v325 = vld [vmem:[#allocation2 + $0x13c] sm:$0xf]
    %v326 = vld [vmem:[#allocation2 + $0x140] sm:$0xf]
    %v327 = vld [vmem:[#allocation2 + $0x144] sm:$0xf]
    %v328 = vld [vmem:[#allocation2 + $0x148] sm:$0xf]
    %v329 = vld [vmem:[#allocation2 + $0x14c] sm:$0xf]
    %v330 = vld [vmem:[#allocation2 + $0x150] sm:$0xf]
    %v331 = vld [vmem:[#allocation2 + $0x154] sm:$0xf]
    %v332 = vld [vmem:[#allocation2 + $0x158] sm:$0xf]
    %v333 = vld [vmem:[#allocation2 + $0x15c] sm:$0xf]
    %v334 = vld [vmem:[#allocation2 + $0x160] sm:$0xf]
    %v335 = vld [vmem:[#allocation2 + $0x164] sm:$0xf]
    %v336 = vld [vmem:[#allocation2 + $0x168] sm:$0xf]
    %v337 = vld [vmem:[#allocation2 + $0x16c] sm:$0xf]
    %v338 = vld [vmem:[#allocation2 + $0x170] sm:$0xf]
    %v339 = vld [vmem:[#allocation2 + $0x174] sm:$0xf]
    %v340 = vld [vmem:[#allocation2 + $0x178] sm:$0xf]
    %v341 = vld [vmem:[#allocation2 + $0x17c] sm:$0xf]
    %v342 = vld [vmem:[#allocation2 + $0x180] sm:$0xf]
    %v343 = vld [vmem:[#allocation2 + $0x184] sm:$0xf]
    %v344 = vld [vmem:[#allocation2 + $0x188] sm:$0xf]
    %v345 = vld [vmem:[#allocation2 + $0x18c] sm:$0xf]
    %v346 = vld [vmem:[#allocation2 + $0x190] sm:$0xf]
    %v347 = vld [vmem:[#allocation2 + $0x194] sm:$0xf]
    %v348 = vld [vmem:[#allocation2 + $0x198] sm:$0xf]
    %v349 = vld [vmem:[#allocation2 + $0x19c] sm:$0xf]
    %v350 = vld [vmem:[#allocation2 + $0x1a0] sm:$0xf]
    %v351 = vld [vmem:[#allocation2 + $0x1a4] sm:$0xf]
    %v352 = vld [vmem:[#allocation2 + $0x1a8] sm:$0xf]
    %v353 = vld [vmem:[#allocation2 + $0x1ac] sm:$0xf]
    %v354 = vld [vmem:[#allocation2 + $0x1b0] sm:$0xf]
    %v355 = vld [vmem:[#allocation2 + $0x1b4] sm:$0xf]
    %v356 = vld [vmem:[#allocation2 + $0x1b8] sm:$0xf]
    %v357 = vld [vmem:[#allocation2 + $0x1bc] sm:$0xf]
    %v358 = vld [vmem:[#allocation2 + $0x1c0] sm:$0xf]
    %v359 = vld [vmem:[#allocation2 + $0x1c4] sm:$0xf]
    %v360 = vld [vmem:[#allocation2 + $0x1c8] sm:$0xf]
    %v361 = vld [vmem:[#allocation2 + $0x1cc] sm:$0xf]
    %v362 = vld [vmem:[#allocation2 + $0x1d0] sm:$0xf]
    %v363 = vld [vmem:[#allocation2 + $0x1d4] sm:$0xf]
    %v364 = vld [vmem:[#allocation2 + $0x1d8] sm:$0xf]
    %v365 = vld [vmem:[#allocation2 + $0x1dc] sm:$0xf]
    %v366 = vld [vmem:[#allocation2 + $0x1e0] sm:$0xf]
    %v367 = vld [vmem:[#allocation2 + $0x1e4] sm:$0xf]
    %v368 = vld [vmem:[#allocation2 + $0x1e8] sm:$0xf]
    %v369 = vld [vmem:[#allocation2 + $0x1ec] sm:$0xf]
    %v370 = vld [vmem:[#allocation2 + $0x1f0] sm:$0xf]
    %v371 = vld [vmem:[#allocation2 + $0x1f4] sm:$0xf]
    %v372 = vld [vmem:[#allocation2 + $0x1f8] sm:$0xf]
    %v373 = vld [vmem:[#allocation2 + $0x1fc] sm:$0xf]
    %v374 = vld [vmem:[#allocation2 + $0x200] sm:$0xf]
    %v375 = vld [vmem:[#allocation2 + $0x204] sm:$0xf]
    %v376 = vld [vmem:[#allocation2 + $0x208] sm:$0xf]
    %v377 = vld [vmem:[#allocation2 + $0x20c] sm:$0xf]
    %v378 = vld [vmem:[#allocation2 + $0x210] sm:$0xf]
    %v379 = vld [vmem:[#allocation2 + $0x214] sm:$0xf]
    %v380 = vld [vmem:[#allocation2 + $0x218] sm:$0xf]
    %v381 = vld [vmem:[#allocation2 + $0x21c] sm:$0xf]
    %v382 = vld [vmem:[#allocation2 + $0x220] sm:$0xf]
    %v383 = vld [vmem:[#allocation2 + $0x224] sm:$0xf]
    %v384 = vld [vmem:[#allocation2 + $0x228] sm:$0xf]
    %v385 = vld [vmem:[#allocation2 + $0x22c] sm:$0xf]
    %v386 = vld [vmem:[#allocation2 + $0x230] sm:$0xf]
    %v387 = vld [vmem:[#allocation2 + $0x234] sm:$0xf]
    %v388 = vld [vmem:[#allocation2 + $0x238] sm:$0xf]
    %v389 = vld [vmem:[#allocation2 + $0x23c] sm:$0xf]
    %v390 = vld [vmem:[#allocation2 + $0x240] sm:$0xf]
    %v391 = vld [vmem:[#allocation2 + $0x244] sm:$0xf]
    %v392 = vld [vmem:[#allocation2 + $0x248] sm:$0xf]
    %v393 = vld [vmem:[#allocation2 + $0x24c] sm:$0xf]
    %v394 = vld [vmem:[#allocation2 + $0x250] sm:$0xf]
    %v395 = vld [vmem:[#allocation2 + $0x254] sm:$0xf]
    %v396 = vld [vmem:[#allocation2 + $0x258] sm:$0xf]
    %v397 = vld [vmem:[#allocation2 + $0x25c] sm:$0xf]
    %v398 = vld [vmem:[#allocation2 + $0x260] sm:$0xf]
    %v399 = vld [vmem:[#allocation2 + $0x264] sm:$0xf]
    %v400 = vld [vmem:[#allocation2 + $0x268] sm:$0xf]
    %v401 = vld [vmem:[#allocation2 + $0x26c] sm:$0xf]
    %v402 = vld [vmem:[#allocation2 + $0x270] sm:$0xf]
    %v403 = vld [vmem:[#allocation2 + $0x274] sm:$0xf]
    %v404 = vld [vmem:[#allocation2 + $0x278] sm:$0xf]
    %v405 = vld [vmem:[#allocation2 + $0x27c] sm:$0xf]
    %v406 = vld [vmem:[#allocation2 + $0x280] sm:$0xf]
    %v407 = vld [vmem:[#allocation2 + $0x284] sm:$0xf]
    %v408 = vld [vmem:[#allocation2 + $0x288] sm:$0xf]
    %v409 = vld [vmem:[#allocation2 + $0x28c] sm:$0xf]
    %v410 = vld [vmem:[#allocation2 + $0x290] sm:$0xf]
    %v411 = vld [vmem:[#allocation2 + $0x294] sm:$0xf]
    %v412 = vld [vmem:[#allocation2 + $0x298] sm:$0xf]
    %v413 = vld [vmem:[#allocation2 + $0x29c] sm:$0xf]
    %v414 = vld [vmem:[#allocation2 + $0x2a0] sm:$0xf]
    %v415 = vld [vmem:[#allocation2 + $0x2a4] sm:$0xf]
    %v416 = vld [vmem:[#allocation2 + $0x2a8] sm:$0xf]
    %v417 = vld [vmem:[#allocation2 + $0x2ac] sm:$0xf]
    %v418 = vld [vmem:[#allocation2 + $0x2b0] sm:$0xf]
    %v419 = vld [vmem:[#allocation2 + $0x2b4] sm:$0xf]
    %v420 = vld [vmem:[#allocation2 + $0x2b8] sm:$0xf]
    %v421 = vld [vmem:[#allocation2 + $0x2bc] sm:$0xf]
    %v422 = vld [vmem:[#allocation2 + $0x2c0] sm:$0xf]
    %v423 = vld [vmem:[#allocation2 + $0x2c4] sm:$0xf]
    %v424 = vld [vmem:[#allocation2 + $0x2c8] sm:$0xf]
    %v425 = vld [vmem:[#allocation2 + $0x2cc] sm:$0xf]
    %v426 = vld [vmem:[#allocation2 + $0x2d0] sm:$0xf]
    %v427 = vld [vmem:[#allocation2 + $0x2d4] sm:$0xf]
    %v428 = vld [vmem:[#allocation2 + $0x2d8] sm:$0xf]
    %v429 = vld [vmem:[#allocation2 + $0x2dc] sm:$0xf]
    %v430 = vld [vmem:[#allocation2 + $0x2e0] sm:$0xf]
    %v431 = vld [vmem:[#allocation2 + $0x2e4] sm:$0xf]
    %v432 = vld [vmem:[#allocation2 + $0x2e8] sm:$0xf]
    %v433 = vld [vmem:[#allocation2 + $0x2ec] sm:$0xf]
    %v434 = vld [vmem:[#allocation2 + $0x2f0] sm:$0xf]
    %v435 = vld [vmem:[#allocation2 + $0x2f4] sm:$0xf]
    %v436 = vld [vmem:[#allocation2 + $0x2f8] sm:$0xf]
    %v437 = vld [vmem:[#allocation2 + $0x2fc] sm:$0xf]
    %v438 = vld [vmem:[#allocation2 + $0x300] sm:$0xf]
    %v439 = vld [vmem:[#allocation2 + $0x304] sm:$0xf]
    %v440 = vld [vmem:[#allocation2 + $0x308] sm:$0xf]
    %v441 = vld [vmem:[#allocation2 + $0x30c] sm:$0xf]
    %v442 = vld [vmem:[#allocation2 + $0x310] sm:$0xf]
    %v443 = vld [vmem:[#allocation2 + $0x314] sm:$0xf]
    %v444 = vld [vmem:[#allocation2 + $0x318] sm:$0xf]
    %v445 = vld [vmem:[#allocation2 + $0x31c] sm:$0xf]
    %v446 = vld [vmem:[#allocation2 + $0x320] sm:$0xf]
    %v447 = vld [vmem:[#allocation2 + $0x324] sm:$0xf]
    %v448 = vld [vmem:[#allocation2 + $0x328] sm:$0xf]
    %v449 = vld [vmem:[#allocation2 + $0x32c] sm:$0xf]
    %v450 = vld [vmem:[#allocation2 + $0x330] sm:$0xf]
    %v451 = vld [vmem:[#allocation2 + $0x334] sm:$0xf]
    %v452 = vld [vmem:[#allocation2 + $0x338] sm:$0xf]
    %v453 = vld [vmem:[#allocation2 + $0x33c] sm:$0xf]
    %v454 = vld [vmem:[#allocation2 + $0x340] sm:$0xf]
    %v455 = vld [vmem:[#allocation2 + $0x344] sm:$0xf]
    %v456 = vld [vmem:[#allocation2 + $0x348] sm:$0xf]
    %v457 = vld [vmem:[#allocation2 + $0x34c] sm:$0xf]
    %v458 = vld [vmem:[#allocation2 + $0x350] sm:$0xf]
    %v459 = vld [vmem:[#allocation2 + $0x354] sm:$0xf]
    %v460 = vld [vmem:[#allocation2 + $0x358] sm:$0xf]
    %v461 = vld [vmem:[#allocation2 + $0x35c] sm:$0xf]
    %v462 = vld [vmem:[#allocation2 + $0x360] sm:$0xf]
    %v463 = vld [vmem:[#allocation2 + $0x364] sm:$0xf]
    %v464 = vld [vmem:[#allocation2 + $0x368] sm:$0xf]
    %v465 = vld [vmem:[#allocation2 + $0x36c] sm:$0xf]
    %v466 = vld [vmem:[#allocation2 + $0x370] sm:$0xf]
    %v467 = vld [vmem:[#allocation2 + $0x374] sm:$0xf]
    %v468 = vld [vmem:[#allocation2 + $0x378] sm:$0xf]
    %v469 = vld [vmem:[#allocation2 + $0x37c] sm:$0xf]
    %v470 = vld [vmem:[#allocation2 + $0x380] sm:$0xf]
    %v471 = vld [vmem:[#allocation2 + $0x384] sm:$0xf]
    %v472 = vld [vmem:[#allocation2 + $0x388] sm:$0xf]
    %v473 = vld [vmem:[#allocation2 + $0x38c] sm:$0xf]
    %v474 = vld [vmem:[#allocation2 + $0x390] sm:$0xf]
    %v475 = vld [vmem:[#allocation2 + $0x394] sm:$0xf]
    %v476 = vld [vmem:[#allocation2 + $0x398] sm:$0xf]
    %v477 = vld [vmem:[#allocation2 + $0x39c] sm:$0xf]
    %v478 = vld [vmem:[#allocation2 + $0x3a0] sm:$0xf]
    %v479 = vld [vmem:[#allocation2 + $0x3a4] sm:$0xf]
    %v480 = vld [vmem:[#allocation2 + $0x3a8] sm:$0xf]
    %v481 = vld [vmem:[#allocation2 + $0x3ac] sm:$0xf]
    %v482 = vld [vmem:[#allocation2 + $0x3b0] sm:$0xf]
    %v483 = vld [vmem:[#allocation2 + $0x3b4] sm:$0xf]
    %v484 = vld [vmem:[#allocation2 + $0x3b8] sm:$0xf]
    %v485 = vld [vmem:[#allocation2 + $0x3bc] sm:$0xf]
    %v486 = vld [vmem:[#allocation2 + $0x3c0] sm:$0xf]
    %v487 = vld [vmem:[#allocation2 + $0x3c4] sm:$0xf]
    %v488 = vld [vmem:[#allocation2 + $0x3c8] sm:$0xf]
    %v489 = vld [vmem:[#allocation2 + $0x3cc] sm:$0xf]
    %v490 = vld [vmem:[#allocation2 + $0x3d0] sm:$0xf]
    %v491 = vld [vmem:[#allocation2 + $0x3d4] sm:$0xf]
    %v492 = vld [vmem:[#allocation2 + $0x3d8] sm:$0xf]
    %v493 = vld [vmem:[#allocation2 + $0x3dc] sm:$0xf]
    %v494 = vld [vmem:[#allocation2 + $0x3e0] sm:$0xf]
    %v495 = vld [vmem:[#allocation2 + $0x3e4] sm:$0xf]
    %v496 = vld [vmem:[#allocation2 + $0x3e8] sm:$0xf]
    %v497 = vld [vmem:[#allocation2 + $0x3ec] sm:$0xf]
    %v498 = vld [vmem:[#allocation2 + $0x3f0] sm:$0xf]
    %v499 = vld [vmem:[#allocation2 + $0x3f4] sm:$0xf]
    %v500 = vld [vmem:[#allocation2 + $0x3f8] sm:$0xf]
    %v501 = vld [vmem:[#allocation2 + $0x3fc] sm:$0xf]
    %v502 = vld [vmem:[#allocation2 + $0x400] sm:$0xf]
    %v503 = vld [vmem:[#allocation2 + $0x404] sm:$0xf]
    %v504 = vld [vmem:[#allocation2 + $0x408] sm:$0xf]
    %v505 = vld [vmem:[#allocation2 + $0x40c] sm:$0xf]
    %v506 = vld [vmem:[#allocation2 + $0x410] sm:$0xf]
    %v507 = vld [vmem:[#allocation2 + $0x414] sm:$0xf]
    %v508 = vld [vmem:[#allocation2 + $0x418] sm:$0xf]
    %v509 = vld [vmem:[#allocation2 + $0x41c] sm:$0xf]
    %v510 = vld [vmem:[#allocation2 + $0x420] sm:$0xf]
    %v511 = vld [vmem:[#allocation2 + $0x424] sm:$0xf]
    %v512 = vld [vmem:[#allocation2 + $0x428] sm:$0xf]
    %v513 = vld [vmem:[#allocation2 + $0x42c] sm:$0xf]
    %v514 = vld [vmem:[#allocation2 + $0x430] sm:$0xf]
    %v515 = vld [vmem:[#allocation2 + $0x434] sm:$0xf]
    %v516 = vld [vmem:[#allocation2 + $0x438] sm:$0xf]
    %v517 = vld [vmem:[#allocation2 + $0x43c] sm:$0xf]
    %v518 = vld [vmem:[#allocation2 + $0x440] sm:$0xf]
    %v519 = vld [vmem:[#allocation2 + $0x444] sm:$0xf]
    %v520 = vld [vmem:[#allocation2 + $0x448] sm:$0xf]
    %v521 = vld [vmem:[#allocation2 + $0x44c] sm:$0xf]
    %v522 = vld [vmem:[#allocation2 + $0x450] sm:$0xf]
    %v523 = vld [vmem:[#allocation2 + $0x454] sm:$0xf]
    %v524 = vld [vmem:[#allocation2 + $0x458] sm:$0xf]
    %v525 = vld [vmem:[#allocation2 + $0x45c] sm:$0xf]
    %v526 = vld [vmem:[#allocation2 + $0x460] sm:$0xf]
    %v527 = vld [vmem:[#allocation2 + $0x464] sm:$0xf]
    %v528 = vld [vmem:[#allocation2 + $0x468] sm:$0xf]
    %v529 = vld [vmem:[#allocation2 + $0x46c] sm:$0xf]
    %v530 = vld [vmem:[#allocation2 + $0x470] sm:$0xf]
    %v531 = vld [vmem:[#allocation2 + $0x474] sm:$0xf]
    %v532 = vld [vmem:[#allocation2 + $0x478] sm:$0xf]
    %v533 = vld [vmem:[#allocation2 + $0x47c] sm:$0xf]
    %v534 = vld [vmem:[#allocation2 + $0x480] sm:$0xf]
    %v535 = vld [vmem:[#allocation2 + $0x484] sm:$0xf]
    %v536 = vld [vmem:[#allocation2 + $0x488] sm:$0xf]
    %v537 = vld [vmem:[#allocation2 + $0x48c] sm:$0xf]
    %v538 = vld [vmem:[#allocation2 + $0x490] sm:$0xf]
    %v539 = vld [vmem:[#allocation2 + $0x494] sm:$0xf]
    %v540 = vld [vmem:[#allocation2 + $0x498] sm:$0xf]
    %v541 = vld [vmem:[#allocation2 + $0x49c] sm:$0xf]
    %v542 = vld [vmem:[#allocation2 + $0x4a0] sm:$0xf]
    %v543 = vld [vmem:[#allocation2 + $0x4a4] sm:$0xf]
    %v544 = vld [vmem:[#allocation2 + $0x4a8] sm:$0xf]
    %v545 = vld [vmem:[#allocation2 + $0x4ac] sm:$0xf]
    %v546 = vld [vmem:[#allocation2 + $0x4b0] sm:$0xf]
    %v547 = vld [vmem:[#allocation2 + $0x4b4] sm:$0xf]
    %v548 = vld [vmem:[#allocation2 + $0x4b8] sm:$0xf]
    %v549 = vld [vmem:[#allocation2 + $0x4bc] sm:$0xf]
    %v550 = vld [vmem:[#allocation2 + $0x4c0] sm:$0xf]
    %v551 = vld [vmem:[#allocation2 + $0x4c4] sm:$0xf]
    %v552 = vld [vmem:[#allocation2 + $0x4c8] sm:$0xf]
    %v553 = vld [vmem:[#allocation2 + $0x4cc] sm:$0xf]
    %v554 = vld [vmem:[#allocation2 + $0x4d0] sm:$0xf]
    %v555 = vld [vmem:[#allocation2 + $0x4d4] sm:$0xf]
    %v556 = vld [vmem:[#allocation2 + $0x4d8] sm:$0xf]
    %v557 = vld [vmem:[#allocation2 + $0x4dc] sm:$0xf]
    %v558 = vld [vmem:[#allocation2 + $0x4e0] sm:$0xf]
    %v559 = vld [vmem:[#allocation2 + $0x4e4] sm:$0xf]
    %v560 = vld [vmem:[#allocation2 + $0x4e8] sm:$0xf]
    %v561 = vld [vmem:[#allocation2 + $0x4ec] sm:$0xf]
    %v562 = vld [vmem:[#allocation2 + $0x4f0] sm:$0xf]
    %v563 = vld [vmem:[#allocation2 + $0x4f4] sm:$0xf]
    %v564 = vld [vmem:[#allocation2 + $0x4f8] sm:$0xf]
    %v565 = vld [vmem:[#allocation2 + $0x4fc] sm:$0xf]
    %v566 = vld [vmem:[#allocation2 + $0x500] sm:$0xf]
    %v567 = vld [vmem:[#allocation2 + $0x504] sm:$0xf]
    %v568 = vld [vmem:[#allocation2 + $0x508] sm:$0xf]
    %v569 = vld [vmem:[#allocation2 + $0x50c] sm:$0xf]
    %v570 = vld [vmem:[#allocation2 + $0x510] sm:$0xf]
    %v571 = vld [vmem:[#allocation2 + $0x514] sm:$0xf]
    %v572 = vld [vmem:[#allocation2 + $0x518] sm:$0xf]
    %v573 = vld [vmem:[#allocation2 + $0x51c] sm:$0xf]
    %v574 = vld [vmem:[#allocation2 + $0x520] sm:$0xf]
    %v575 = vld [vmem:[#allocation2 + $0x524] sm:$0xf]
    %v576 = vld [vmem:[#allocation2 + $0x528] sm:$0xf]
    %v577 = vld [vmem:[#allocation2 + $0x52c] sm:$0xf]
    %v578 = vld [vmem:[#allocation2 + $0x530] sm:$0xf]
    %v579 = vld [vmem:[#allocation2 + $0x534] sm:$0xf]
    %v580 = vld [vmem:[#allocation2 + $0x538] sm:$0xf]
    %v581 = vld [vmem:[#allocation2 + $0x53c] sm:$0xf]
    %v582 = vld [vmem:[#allocation2 + $0x540] sm:$0xf]
    %v583 = vld [vmem:[#allocation2 + $0x544] sm:$0xf]
    %v584 = vld [vmem:[#allocation2 + $0x548] sm:$0xf]
    %v585 = vld [vmem:[#allocation2 + $0x54c] sm:$0xf]
    %v586 = vld [vmem:[#allocation2 + $0x550] sm:$0xf]
    %v587 = vld [vmem:[#allocation2 + $0x554] sm:$0xf]
    %v588 = vld [vmem:[#allocation2 + $0x558] sm:$0xf]
    %v589 = vld [vmem:[#allocation2 + $0x55c] sm:$0xf]
    %v590 = vld [vmem:[#allocation2 + $0x560] sm:$0xf]
    %v591 = vld [vmem:[#allocation2 + $0x564] sm:$0xf]
    %v592 = vld [vmem:[#allocation2 + $0x568] sm:$0xf]
    %v593 = vld [vmem:[#allocation2 + $0x56c] sm:$0xf]
    %v594 = vld [vmem:[#allocation2 + $0x570] sm:$0xf]
    %v595 = vld [vmem:[#allocation2 + $0x574] sm:$0xf]
    %v596 = vld [vmem:[#allocation2 + $0x578] sm:$0xf]
    %v597 = vld [vmem:[#allocation2 + $0x57c] sm:$0xf]
    %v598 = vld [vmem:[#allocation2 + $0x580] sm:$0xf]
    %v599 = vld [vmem:[#allocation2 + $0x584] sm:$0xf]
    %v600 = vld [vmem:[#allocation2 + $0x588] sm:$0xf]
    %v601 = vld [vmem:[#allocation2 + $0x58c] sm:$0xf]
    %v602 = vld [vmem:[#allocation2 + $0x590] sm:$0xf]
    %v603 = vld [vmem:[#allocation2 + $0x594] sm:$0xf]
    %v604 = vld [vmem:[#allocation2 + $0x598] sm:$0xf]
    %v605 = vld [vmem:[#allocation2 + $0x59c] sm:$0xf]
    %v606 = vld [vmem:[#allocation2 + $0x5a0] sm:$0xf]
    %v607 = vld [vmem:[#allocation2 + $0x5a4] sm:$0xf]
    %v608 = vld [vmem:[#allocation2 + $0x5a8] sm:$0xf]
    %v609 = vld [vmem:[#allocation2 + $0x5ac] sm:$0xf]
    %v610 = vld [vmem:[#allocation2 + $0x5b0] sm:$0xf]
    %v611 = vld [vmem:[#allocation2 + $0x5b4] sm:$0xf]
    %v612 = vld [vmem:[#allocation2 + $0x5b8] sm:$0xf]
    %v613 = vld [vmem:[#allocation2 + $0x5bc] sm:$0xf]
    %v614 = vld [vmem:[#allocation2 + $0x5c0] sm:$0xf]
    %v615 = vld [vmem:[#allocation2 + $0x5c4] sm:$0xf]
    %v616 = vld [vmem:[#allocation2 + $0x5c8] sm:$0xf]
    %v617 = vld [vmem:[#allocation2 + $0x5cc] sm:$0xf]
    %v618 = vld [vmem:[#allocation2 + $0x5d0] sm:$0xf]
    %v619 = vld [vmem:[#allocation2 + $0x5d4] sm:$0xf]
    %v620 = vld [vmem:[#allocation2 + $0x5d8] sm:$0xf]
    %v621 = vld [vmem:[#allocation2 + $0x5dc] sm:$0xf]
    %v622 = vld [vmem:[#allocation2 + $0x5e0] sm:$0xf]
    %v623 = vld [vmem:[#allocation2 + $0x5e4] sm:$0xf]
    %v624 = vld [vmem:[#allocation2 + $0x5e8] sm:$0xf]
    %v625 = vld [vmem:[#allocation2 + $0x5ec] sm:$0xf]
    %v626 = vld [vmem:[#allocation2 + $0x5f0] sm:$0xf]
    %v627 = vld [vmem:[#allocation2 + $0x5f4] sm:$0xf]
    %v628 = vld [vmem:[#allocation2 + $0x5f8] sm:$0xf]
    %v629 = vld [vmem:[#allocation2 + $0x5fc] sm:$0xf]
    %v630 = vld [vmem:[#allocation2 + $0x600] sm:$0xf]
    %v631 = vld [vmem:[#allocation2 + $0x604] sm:$0xf]
    %v632 = vld [vmem:[#allocation2 + $0x608] sm:$0xf]
    %v633 = vld [vmem:[#allocation2 + $0x60c] sm:$0xf]
    %v634 = vld [vmem:[#allocation2 + $0x610] sm:$0xf]
    %v635 = vld [vmem:[#allocation2 + $0x614] sm:$0xf]
    %v636 = vld [vmem:[#allocation2 + $0x618] sm:$0xf]
    %v637 = vld [vmem:[#allocation2 + $0x61c] sm:$0xf]
    %v638 = vld [vmem:[#allocation2 + $0x620] sm:$0xf]
    %v639 = vld [vmem:[#allocation2 + $0x624] sm:$0xf]
    %v640 = vld [vmem:[#allocation2 + $0x628] sm:$0xf]
    %v641 = vld [vmem:[#allocation2 + $0x62c] sm:$0xf]
    %v642 = vld [vmem:[#allocation2 + $0x630] sm:$0xf]
    %v643 = vld [vmem:[#allocation2 + $0x634] sm:$0xf]
    %v644 = vld [vmem:[#allocation2 + $0x638] sm:$0xf]
    %v645 = vld [vmem:[#allocation2 + $0x63c] sm:$0xf]
    %v646 = vld [vmem:[#allocation2 + $0x640] sm:$0xf]
    %v647 = vld [vmem:[#allocation2 + $0x644] sm:$0xf]
    %v648 = vld [vmem:[#allocation2 + $0x648] sm:$0xf]
    %v649 = vld [vmem:[#allocation2 + $0x64c] sm:$0xf]
    %v650 = vld [vmem:[#allocation2 + $0x650] sm:$0xf]
    %v651 = vld [vmem:[#allocation2 + $0x654] sm:$0xf]
    %v652 = vld [vmem:[#allocation2 + $0x658] sm:$0xf]
    %v653 = vld [vmem:[#allocation2 + $0x65c] sm:$0xf]
    %v654 = vld [vmem:[#allocation2 + $0x660] sm:$0xf]
    %v655 = vld [vmem:[#allocation2 + $0x664] sm:$0xf]
    %v656 = vld [vmem:[#allocation2 + $0x668] sm:$0xf]
    %v657 = vld [vmem:[#allocation2 + $0x66c] sm:$0xf]
    %v658 = vld [vmem:[#allocation2 + $0x670] sm:$0xf]
    %v659 = vld [vmem:[#allocation2 + $0x674] sm:$0xf]
    %v660 = vld [vmem:[#allocation2 + $0x678] sm:$0xf]
    %v661 = vld [vmem:[#allocation2 + $0x67c] sm:$0xf]
    %v662 = vld [vmem:[#allocation2 + $0x680] sm:$0xf]
    %v663 = vld [vmem:[#allocation2 + $0x684] sm:$0xf]
    %v664 = vld [vmem:[#allocation2 + $0x688] sm:$0xf]
    %v665 = vld [vmem:[#allocation2 + $0x68c] sm:$0xf]
    %v666 = vld [vmem:[#allocation2 + $0x690] sm:$0xf]
    %v667 = vld [vmem:[#allocation2 + $0x694] sm:$0xf]
    %v668 = vld [vmem:[#allocation2 + $0x698] sm:$0xf]
    %v669 = vld [vmem:[#allocation2 + $0x69c] sm:$0xf]
    %v670 = vld [vmem:[#allocation2 + $0x6a0] sm:$0xf]
    %v671 = vld [vmem:[#allocation2 + $0x6a4] sm:$0xf]
    %v672 = vld [vmem:[#allocation2 + $0x6a8] sm:$0xf]
    %v673 = vld [vmem:[#allocation2 + $0x6ac] sm:$0xf]
    %v674 = vld [vmem:[#allocation2 + $0x6b0] sm:$0xf]
    %v675 = vld [vmem:[#allocation2 + $0x6b4] sm:$0xf]
    %v676 = vld [vmem:[#allocation2 + $0x6b8] sm:$0xf]
    %v677 = vld [vmem:[#allocation2 + $0x6bc] sm:$0xf]
    %v678 = vld [vmem:[#allocation2 + $0x6c0] sm:$0xf]
    %v679 = vld [vmem:[#allocation2 + $0x6c4] sm:$0xf]
    %v680 = vld [vmem:[#allocation2 + $0x6c8] sm:$0xf]
    %v681 = vld [vmem:[#allocation2 + $0x6cc] sm:$0xf]
    %v682 = vld [vmem:[#allocation2 + $0x6d0] sm:$0xf]
    %v683 = vld [vmem:[#allocation2 + $0x6d4] sm:$0xf]
    %v684 = vld [vmem:[#allocation2 + $0x6d8] sm:$0xf]
    %v685 = vld [vmem:[#allocation2 + $0x6dc] sm:$0xf]
    %v686 = vld [vmem:[#allocation2 + $0x6e0] sm:$0xf]
    %v687 = vld [vmem:[#allocation2 + $0x6e4] sm:$0xf]
    %v688 = vld [vmem:[#allocation2 + $0x6e8] sm:$0xf]
    %v689 = vld [vmem:[#allocation2 + $0x6ec] sm:$0xf]
    %v690 = vld [vmem:[#allocation2 + $0x6f0] sm:$0xf]
    %v691 = vld [vmem:[#allocation2 + $0x6f4] sm:$0xf]
    %v692 = vld [vmem:[#allocation2 + $0x6f8] sm:$0xf]
    %v693 = vld [vmem:[#allocation2 + $0x6fc] sm:$0xf]
    %v694 = vld [vmem:[#allocation2 + $0x700] sm:$0xf]
    %v695 = vld [vmem:[#allocation2 + $0x704] sm:$0xf]
    %v696 = vld [vmem:[#allocation2 + $0x708] sm:$0xf]
    %v697 = vld [vmem:[#allocation2 + $0x70c] sm:$0xf]
    %v698 = vld [vmem:[#allocation2 + $0x710] sm:$0xf]
    %v699 = vld [vmem:[#allocation2 + $0x714] sm:$0xf]
    %v700 = vld [vmem:[#allocation2 + $0x718] sm:$0xf]
    %v701 = vld [vmem:[#allocation2 + $0x71c] sm:$0xf]
    %v702 = vld [vmem:[#allocation2 + $0x720] sm:$0xf]
    %v703 = vld [vmem:[#allocation2 + $0x724] sm:$0xf]
    %v704 = vld [vmem:[#allocation2 + $0x728] sm:$0xf]
    %v705 = vld [vmem:[#allocation2 + $0x72c] sm:$0xf]
    %v706 = vld [vmem:[#allocation2 + $0x730] sm:$0xf]
    %v707 = vld [vmem:[#allocation2 + $0x734] sm:$0xf]
    %v708 = vld [vmem:[#allocation2 + $0x738] sm:$0xf]
    %v709 = vld [vmem:[#allocation2 + $0x73c] sm:$0xf]
    %v710 = vld [vmem:[#allocation2 + $0x740] sm:$0xf]
    %v711 = vld [vmem:[#allocation2 + $0x744] sm:$0xf]
    %v712 = vld [vmem:[#allocation2 + $0x748] sm:$0xf]
    %v713 = vld [vmem:[#allocation2 + $0x74c] sm:$0xf]
    %v714 = vld [vmem:[#allocation2 + $0x750] sm:$0xf]
    %v715 = vld [vmem:[#allocation2 + $0x754] sm:$0xf]
    %v716 = vld [vmem:[#allocation2 + $0x758] sm:$0xf]
    %v717 = vld [vmem:[#allocation2 + $0x75c] sm:$0xf]
    %v718 = vld [vmem:[#allocation2 + $0x760] sm:$0xf]
    %v719 = vld [vmem:[#allocation2 + $0x764] sm:$0xf]
    %v720 = vld [vmem:[#allocation2 + $0x768] sm:$0xf]
    %v721 = vld [vmem:[#allocation2 + $0x76c] sm:$0xf]
    %v722 = vld [vmem:[#allocation2 + $0x770] sm:$0xf]
    %v723 = vld [vmem:[#allocation2 + $0x774] sm:$0xf]
    %v724 = vld [vmem:[#allocation2 + $0x778] sm:$0xf]
    %v725 = vld [vmem:[#allocation2 + $0x77c] sm:$0xf]
    %v726 = vld [vmem:[#allocation2 + $0x780] sm:$0xf]
    %v727 = vld [vmem:[#allocation2 + $0x784] sm:$0xf]
    %v728 = vld [vmem:[#allocation2 + $0x788] sm:$0xf]
    %v729 = vld [vmem:[#allocation2 + $0x78c] sm:$0xf]
    %v730 = vld [vmem:[#allocation2 + $0x790] sm:$0xf]
    %v731 = vld [vmem:[#allocation2 + $0x794] sm:$0xf]
    %v732 = vld [vmem:[#allocation2 + $0x798] sm:$0xf]
    %v733 = vld [vmem:[#allocation2 + $0x79c] sm:$0xf]
    %v734 = vld [vmem:[#allocation2 + $0x7a0] sm:$0xf]
    %v735 = vld [vmem:[#allocation2 + $0x7a4] sm:$0xf]
    %v736 = vld [vmem:[#allocation2 + $0x7a8] sm:$0xf]
    %v737 = vld [vmem:[#allocation2 + $0x7ac] sm:$0xf]
    %v738 = vld [vmem:[#allocation2 + $0x7b0] sm:$0xf]
    %v739 = vld [vmem:[#allocation2 + $0x7b4] sm:$0xf]
    %v740 = vld [vmem:[#allocation2 + $0x7b8] sm:$0xf]
    %v741 = vld [vmem:[#allocation2 + $0x7bc] sm:$0xf]
    %v742 = vld [vmem:[#allocation2 + $0x7c0] sm:$0xf]
    %v743 = vld [vmem:[#allocation2 + $0x7c4] sm:$0xf]
    %v744 = vld [vmem:[#allocation2 + $0x7c8] sm:$0xf]
    %v745 = vld [vmem:[#allocation2 + $0x7cc] sm:$0xf]
    %v746 = vld [vmem:[#allocation2 + $0x7d0] sm:$0xf]
    %v747 = vld [vmem:[#allocation2 + $0x7d4] sm:$0xf]
    %v748 = vld [vmem:[#allocation2 + $0x7d8] sm:$0xf]
    %v749 = vld [vmem:[#allocation2 + $0x7dc] sm:$0xf]
    %v750 = vld [vmem:[#allocation2 + $0x7e0] sm:$0xf]
    %v751 = vld [vmem:[#allocation2 + $0x7e4] sm:$0xf]
    %v752 = vld [vmem:[#allocation2 + $0x7e8] sm:$0xf]
    %v753 = vld [vmem:[#allocation2 + $0x7ec] sm:$0xf]
    %v754 = vld [vmem:[#allocation2 + $0x7f0] sm:$0xf]
    %v755 = vld [vmem:[#allocation2 + $0x7f4] sm:$0xf]
    %v756 = vld [vmem:[#allocation2 + $0x7f8] sm:$0xf]
    %v757 = vld [vmem:[#allocation2 + $0x7fc] sm:$0xf]
    %v758 = vld [vmem:[%s2] sm:$0x1]
    %v760 = vlaneseq
    %v761 = vshrl.u32 %v760, 7
    %v762 = vsub.s32 0, %v761
    %v763 = vrot.slane %v758, %v762
    %v1277 = vunpack.c.l.b16 %v246
    %v1278 = vunpack.c.l.b16 %v247
    %v1279 = vunpack.c.l.b16 %v248
    %v1280 = vunpack.c.l.b16 %v249
    %v1281 = vunpack.c.l.b16 %v250
    %v1282 = vunpack.c.l.b16 %v251
    %v1283 = vunpack.c.l.b16 %v252
    %v1284 = vunpack.c.l.b16 %v253
    %v1285 = vunpack.c.l.b16 %v254
    %v1286 = vunpack.c.l.b16 %v255
    %v1287 = vunpack.c.l.b16 %v256
    %v1288 = vunpack.c.l.b16 %v257
    %v1289 = vunpack.c.l.b16 %v258
    %v1290 = vunpack.c.l.b16 %v259
    %v1291 = vunpack.c.l.b16 %v260
    %v1292 = vunpack.c.l.b16 %v261
    %v1293 = vunpack.c.l.b16 %v262
    %v1294 = vunpack.c.l.b16 %v263
    %v1295 = vunpack.c.l.b16 %v264
    %v1296 = vunpack.c.l.b16 %v265
    %v1297 = vunpack.c.l.b16 %v266
    %v1298 = vunpack.c.l.b16 %v267
    %v1299 = vunpack.c.l.b16 %v268
    %v1300 = vunpack.c.l.b16 %v269
    %v1301 = vunpack.c.l.b16 %v270
    %v1302 = vunpack.c.l.b16 %v271
    %v1303 = vunpack.c.l.b16 %v272
    %v1304 = vunpack.c.l.b16 %v273
    %v1305 = vunpack.c.l.b16 %v274
    %v1306 = vunpack.c.l.b16 %v275
    %v1307 = vunpack.c.l.b16 %v276
    %v1308 = vunpack.c.l.b16 %v277
    %v1309 = vunpack.c.l.b16 %v278
    %v1310 = vunpack.c.l.b16 %v279
    %v1311 = vunpack.c.l.b16 %v280
    %v1312 = vunpack.c.l.b16 %v281
    %v1313 = vunpack.c.l.b16 %v282
    %v1314 = vunpack.c.l.b16 %v283
    %v1315 = vunpack.c.l.b16 %v284
    %v1316 = vunpack.c.l.b16 %v285
    %v1317 = vunpack.c.l.b16 %v286
    %v1318 = vunpack.c.l.b16 %v287
    %v1319 = vunpack.c.l.b16 %v288
    %v1320 = vunpack.c.l.b16 %v289
    %v1321 = vunpack.c.l.b16 %v290
    %v1322 = vunpack.c.l.b16 %v291
    %v1323 = vunpack.c.l.b16 %v292
    %v1324 = vunpack.c.l.b16 %v293
    %v1325 = vunpack.c.l.b16 %v294
    %v1326 = vunpack.c.l.b16 %v295
    %v1327 = vunpack.c.l.b16 %v296
    %v1328 = vunpack.c.l.b16 %v297
    %v1329 = vunpack.c.l.b16 %v298
    %v1330 = vunpack.c.l.b16 %v299
    %v1331 = vunpack.c.l.b16 %v300
    %v1332 = vunpack.c.l.b16 %v301
    %v1333 = vunpack.c.l.b16 %v302
    %v1334 = vunpack.c.l.b16 %v303
    %v1335 = vunpack.c.l.b16 %v304
    %v1336 = vunpack.c.l.b16 %v305
    %v1337 = vunpack.c.l.b16 %v306
    %v1338 = vunpack.c.l.b16 %v307
    %v1339 = vunpack.c.l.b16 %v308
    %v1340 = vunpack.c.l.b16 %v309
    %v1341 = vunpack.c.l.b16 %v310
    %v1342 = vunpack.c.l.b16 %v311
    %v1343 = vunpack.c.l.b16 %v312
    %v1344 = vunpack.c.l.b16 %v313
    %v1345 = vunpack.c.l.b16 %v314
    %v1346 = vunpack.c.l.b16 %v315
    %v1347 = vunpack.c.l.b16 %v316
    %v1348 = vunpack.c.l.b16 %v317
    %v1349 = vunpack.c.l.b16 %v318
    %v1350 = vunpack.c.l.b16 %v319
    %v1351 = vunpack.c.l.b16 %v320
    %v1352 = vunpack.c.l.b16 %v321
    %v1353 = vunpack.c.l.b16 %v322
    %v1354 = vunpack.c.l.b16 %v323
    %v1355 = vunpack.c.l.b16 %v324
    %v1356 = vunpack.c.l.b16 %v325
    %v1357 = vunpack.c.l.b16 %v326
    %v1358 = vunpack.c.l.b16 %v327
    %v1359 = vunpack.c.l.b16 %v328
    %v1360 = vunpack.c.l.b16 %v329
    %v1361 = vunpack.c.l.b16 %v330
    %v1362 = vunpack.c.l.b16 %v331
    %v1363 = vunpack.c.l.b16 %v332
    %v1364 = vunpack.c.l.b16 %v333
    %v1365 = vunpack.c.l.b16 %v334
    %v1366 = vunpack.c.l.b16 %v335
    %v1367 = vunpack.c.l.b16 %v336
    %v1368 = vunpack.c.l.b16 %v337
    %v1369 = vunpack.c.l.b16 %v338
    %v1370 = vunpack.c.l.b16 %v339
    %v1371 = vunpack.c.l.b16 %v340
    %v1372 = vunpack.c.l.b16 %v341
    %v1373 = vunpack.c.l.b16 %v342
    %v1374 = vunpack.c.l.b16 %v343
    %v1375 = vunpack.c.l.b16 %v344
    %v1376 = vunpack.c.l.b16 %v345
    %v1377 = vunpack.c.l.b16 %v346
    %v1378 = vunpack.c.l.b16 %v347
    %v1379 = vunpack.c.l.b16 %v348
    %v1380 = vunpack.c.l.b16 %v349
    %v1381 = vunpack.c.l.b16 %v350
    %v1382 = vunpack.c.l.b16 %v351
    %v1383 = vunpack.c.l.b16 %v352
    %v1384 = vunpack.c.l.b16 %v353
    %v1385 = vunpack.c.l.b16 %v354
    %v1386 = vunpack.c.l.b16 %v355
    %v1387 = vunpack.c.l.b16 %v356
    %v1388 = vunpack.c.l.b16 %v357
    %v1389 = vunpack.c.l.b16 %v358
    %v1390 = vunpack.c.l.b16 %v359
    %v1391 = vunpack.c.l.b16 %v360
    %v1392 = vunpack.c.l.b16 %v361
    %v1393 = vunpack.c.l.b16 %v362
    %v1394 = vunpack.c.l.b16 %v363
    %v1395 = vunpack.c.l.b16 %v364
    %v1396 = vunpack.c.l.b16 %v365
    %v1397 = vunpack.c.l.b16 %v366
    %v1398 = vunpack.c.l.b16 %v367
    %v1399 = vunpack.c.l.b16 %v368
    %v1400 = vunpack.c.l.b16 %v369
    %v1401 = vunpack.c.l.b16 %v370
    %v1402 = vunpack.c.l.b16 %v371
    %v1403 = vunpack.c.l.b16 %v372
    %v1404 = vunpack.c.l.b16 %v373
    %v1405 = vunpack.c.l.b16 %v374
    %v1406 = vunpack.c.l.b16 %v375
    %v1407 = vunpack.c.l.b16 %v376
    %v1408 = vunpack.c.l.b16 %v377
    %v1409 = vunpack.c.l.b16 %v378
    %v1410 = vunpack.c.l.b16 %v379
    %v1411 = vunpack.c.l.b16 %v380
    %v1412 = vunpack.c.l.b16 %v381
    %v1413 = vunpack.c.l.b16 %v382
    %v1414 = vunpack.c.l.b16 %v383
    %v1415 = vunpack.c.l.b16 %v384
    %v1416 = vunpack.c.l.b16 %v385
    %v1417 = vunpack.c.l.b16 %v386
    %v1418 = vunpack.c.l.b16 %v387
    %v1419 = vunpack.c.l.b16 %v388
    %v1420 = vunpack.c.l.b16 %v389
    %v1421 = vunpack.c.l.b16 %v390
    %v1422 = vunpack.c.l.b16 %v391
    %v1423 = vunpack.c.l.b16 %v392
    %v1424 = vunpack.c.l.b16 %v393
    %v1425 = vunpack.c.l.b16 %v394
    %v1426 = vunpack.c.l.b16 %v395
    %v1427 = vunpack.c.l.b16 %v396
    %v1428 = vunpack.c.l.b16 %v397
    %v1429 = vunpack.c.l.b16 %v398
    %v1430 = vunpack.c.l.b16 %v399
    %v1431 = vunpack.c.l.b16 %v400
    %v1432 = vunpack.c.l.b16 %v401
    %v1433 = vunpack.c.l.b16 %v402
    %v1434 = vunpack.c.l.b16 %v403
    %v1435 = vunpack.c.l.b16 %v404
    %v1436 = vunpack.c.l.b16 %v405
    %v1437 = vunpack.c.l.b16 %v406
    %v1438 = vunpack.c.l.b16 %v407
    %v1439 = vunpack.c.l.b16 %v408
    %v1440 = vunpack.c.l.b16 %v409
    %v1441 = vunpack.c.l.b16 %v410
    %v1442 = vunpack.c.l.b16 %v411
    %v1443 = vunpack.c.l.b16 %v412
    %v1444 = vunpack.c.l.b16 %v413
    %v1445 = vunpack.c.l.b16 %v414
    %v1446 = vunpack.c.l.b16 %v415
    %v1447 = vunpack.c.l.b16 %v416
    %v1448 = vunpack.c.l.b16 %v417
    %v1449 = vunpack.c.l.b16 %v418
    %v1450 = vunpack.c.l.b16 %v419
    %v1451 = vunpack.c.l.b16 %v420
    %v1452 = vunpack.c.l.b16 %v421
    %v1453 = vunpack.c.l.b16 %v422
    %v1454 = vunpack.c.l.b16 %v423
    %v1455 = vunpack.c.l.b16 %v424
    %v1456 = vunpack.c.l.b16 %v425
    %v1457 = vunpack.c.l.b16 %v426
    %v1458 = vunpack.c.l.b16 %v427
    %v1459 = vunpack.c.l.b16 %v428
    %v1460 = vunpack.c.l.b16 %v429
    %v1461 = vunpack.c.l.b16 %v430
    %v1462 = vunpack.c.l.b16 %v431
    %v1463 = vunpack.c.l.b16 %v432
    %v1464 = vunpack.c.l.b16 %v433
    %v1465 = vunpack.c.l.b16 %v434
    %v1466 = vunpack.c.l.b16 %v435
    %v1467 = vunpack.c.l.b16 %v436
    %v1468 = vunpack.c.l.b16 %v437
    %v1469 = vunpack.c.l.b16 %v438
    %v1470 = vunpack.c.l.b16 %v439
    %v1471 = vunpack.c.l.b16 %v440
    %v1472 = vunpack.c.l.b16 %v441
    %v1473 = vunpack.c.l.b16 %v442
    %v1474 = vunpack.c.l.b16 %v443
    %v1475 = vunpack.c.l.b16 %v444
    %v1476 = vunpack.c.l.b16 %v445
    %v1477 = vunpack.c.l.b16 %v446
    %v1478 = vunpack.c.l.b16 %v447
    %v1479 = vunpack.c.l.b16 %v448
    %v1480 = vunpack.c.l.b16 %v449
    %v1481 = vunpack.c.l.b16 %v450
    %v1482 = vunpack.c.l.b16 %v451
    %v1483 = vunpack.c.l.b16 %v452
    %v1484 = vunpack.c.l.b16 %v453
    %v1485 = vunpack.c.l.b16 %v454
    %v1486 = vunpack.c.l.b16 %v455
    %v1487 = vunpack.c.l.b16 %v456
    %v1488 = vunpack.c.l.b16 %v457
    %v1489 = vunpack.c.l.b16 %v458
    %v1490 = vunpack.c.l.b16 %v459
    %v1491 = vunpack.c.l.b16 %v460
    %v1492 = vunpack.c.l.b16 %v461
    %v1493 = vunpack.c.l.b16 %v462
    %v1494 = vunpack.c.l.b16 %v463
    %v1495 = vunpack.c.l.b16 %v464
    %v1496 = vunpack.c.l.b16 %v465
    %v1497 = vunpack.c.l.b16 %v466
    %v1498 = vunpack.c.l.b16 %v467
    %v1499 = vunpack.c.l.b16 %v468
    %v1500 = vunpack.c.l.b16 %v469
    %v1501 = vunpack.c.l.b16 %v470
    %v1502 = vunpack.c.l.b16 %v471
    %v1503 = vunpack.c.l.b16 %v472
    %v1504 = vunpack.c.l.b16 %v473
    %v1505 = vunpack.c.l.b16 %v474
    %v1506 = vunpack.c.l.b16 %v475
    %v1507 = vunpack.c.l.b16 %v476
    %v1508 = vunpack.c.l.b16 %v477
    %v1509 = vunpack.c.l.b16 %v478
    %v1510 = vunpack.c.l.b16 %v479
    %v1511 = vunpack.c.l.b16 %v480
    %v1512 = vunpack.c.l.b16 %v481
    %v1513 = vunpack.c.l.b16 %v482
    %v1514 = vunpack.c.l.b16 %v483
    %v1515 = vunpack.c.l.b16 %v484
    %v1516 = vunpack.c.l.b16 %v485
    %v1517 = vunpack.c.l.b16 %v486
    %v1518 = vunpack.c.l.b16 %v487
    %v1519 = vunpack.c.l.b16 %v488
    %v1520 = vunpack.c.l.b16 %v489
    %v1521 = vunpack.c.l.b16 %v490
    %v1522 = vunpack.c.l.b16 %v491
    %v1523 = vunpack.c.l.b16 %v492
    %v1524 = vunpack.c.l.b16 %v493
    %v1525 = vunpack.c.l.b16 %v494
    %v1526 = vunpack.c.l.b16 %v495
    %v1527 = vunpack.c.l.b16 %v496
    %v1528 = vunpack.c.l.b16 %v497
    %v1529 = vunpack.c.l.b16 %v498
    %v1530 = vunpack.c.l.b16 %v499
    %v1531 = vunpack.c.l.b16 %v500
    %v1532 = vunpack.c.l.b16 %v501
    %v1533 = vunpack.c.l.b16 %v502
    %v1534 = vunpack.c.l.b16 %v503
    %v1535 = vunpack.c.l.b16 %v504
    %v1536 = vunpack.c.l.b16 %v505
    %v1537 = vunpack.c.l.b16 %v506
    %v1538 = vunpack.c.l.b16 %v507
    %v1539 = vunpack.c.l.b16 %v508
    %v1540 = vunpack.c.l.b16 %v509
    %v1541 = vunpack.c.l.b16 %v510
    %v1542 = vunpack.c.l.b16 %v511
    %v1543 = vunpack.c.l.b16 %v512
    %v1544 = vunpack.c.l.b16 %v513
    %v1545 = vunpack.c.l.b16 %v514
    %v1546 = vunpack.c.l.b16 %v515
    %v1547 = vunpack.c.l.b16 %v516
    %v1548 = vunpack.c.l.b16 %v517
    %v1549 = vunpack.c.l.b16 %v518
    %v1550 = vunpack.c.l.b16 %v519
    %v1551 = vunpack.c.l.b16 %v520
    %v1552 = vunpack.c.l.b16 %v521
    %v1553 = vunpack.c.l.b16 %v522
    %v1554 = vunpack.c.l.b16 %v523
    %v1555 = vunpack.c.l.b16 %v524
    %v1556 = vunpack.c.l.b16 %v525
    %v1557 = vunpack.c.l.b16 %v526
    %v1558 = vunpack.c.l.b16 %v527
    %v1559 = vunpack.c.l.b16 %v528
    %v1560 = vunpack.c.l.b16 %v529
    %v1561 = vunpack.c.l.b16 %v530
    %v1562 = vunpack.c.l.b16 %v531
    %v1563 = vunpack.c.l.b16 %v532
    %v1564 = vunpack.c.l.b16 %v533
    %v1565 = vunpack.c.l.b16 %v534
    %v1566 = vunpack.c.l.b16 %v535
    %v1567 = vunpack.c.l.b16 %v536
    %v1568 = vunpack.c.l.b16 %v537
    %v1569 = vunpack.c.l.b16 %v538
    %v1570 = vunpack.c.l.b16 %v539
    %v1571 = vunpack.c.l.b16 %v540
    %v1572 = vunpack.c.l.b16 %v541
    %v1573 = vunpack.c.l.b16 %v542
    %v1574 = vunpack.c.l.b16 %v543
    %v1575 = vunpack.c.l.b16 %v544
    %v1576 = vunpack.c.l.b16 %v545
    %v1577 = vunpack.c.l.b16 %v546
    %v1578 = vunpack.c.l.b16 %v547
    %v1579 = vunpack.c.l.b16 %v548
    %v1580 = vunpack.c.l.b16 %v549
    %v1581 = vunpack.c.l.b16 %v550
    %v1582 = vunpack.c.l.b16 %v551
    %v1583 = vunpack.c.l.b16 %v552
    %v1584 = vunpack.c.l.b16 %v553
    %v1585 = vunpack.c.l.b16 %v554
    %v1586 = vunpack.c.l.b16 %v555
    %v1587 = vunpack.c.l.b16 %v556
    %v1588 = vunpack.c.l.b16 %v557
    %v1589 = vunpack.c.l.b16 %v558
    %v1590 = vunpack.c.l.b16 %v559
    %v1591 = vunpack.c.l.b16 %v560
    %v1592 = vunpack.c.l.b16 %v561
    %v1593 = vunpack.c.l.b16 %v562
    %v1594 = vunpack.c.l.b16 %v563
    %v1595 = vunpack.c.l.b16 %v564
    %v1596 = vunpack.c.l.b16 %v565
    %v1597 = vunpack.c.l.b16 %v566
    %v1598 = vunpack.c.l.b16 %v567
    %v1599 = vunpack.c.l.b16 %v568
    %v1600 = vunpack.c.l.b16 %v569
    %v1601 = vunpack.c.l.b16 %v570
    %v1602 = vunpack.c.l.b16 %v571
    %v1603 = vunpack.c.l.b16 %v572
    %v1604 = vunpack.c.l.b16 %v573
    %v1605 = vunpack.c.l.b16 %v574
    %v1606 = vunpack.c.l.b16 %v575
    %v1607 = vunpack.c.l.b16 %v576
    %v1608 = vunpack.c.l.b16 %v577
    %v1609 = vunpack.c.l.b16 %v578
    %v1610 = vunpack.c.l.b16 %v579
    %v1611 = vunpack.c.l.b16 %v580
    %v1612 = vunpack.c.l.b16 %v581
    %v1613 = vunpack.c.l.b16 %v582
    %v1614 = vunpack.c.l.b16 %v583
    %v1615 = vunpack.c.l.b16 %v584
    %v1616 = vunpack.c.l.b16 %v585
    %v1617 = vunpack.c.l.b16 %v586
    %v1618 = vunpack.c.l.b16 %v587
    %v1619 = vunpack.c.l.b16 %v588
    %v1620 = vunpack.c.l.b16 %v589
    %v1621 = vunpack.c.l.b16 %v590
    %v1622 = vunpack.c.l.b16 %v591
    %v1623 = vunpack.c.l.b16 %v592
    %v1624 = vunpack.c.l.b16 %v593
    %v1625 = vunpack.c.l.b16 %v594
    %v1626 = vunpack.c.l.b16 %v595
    %v1627 = vunpack.c.l.b16 %v596
    %v1628 = vunpack.c.l.b16 %v597
    %v1629 = vunpack.c.l.b16 %v598
    %v1630 = vunpack.c.l.b16 %v599
    %v1631 = vunpack.c.l.b16 %v600
    %v1632 = vunpack.c.l.b16 %v601
    %v1633 = vunpack.c.l.b16 %v602
    %v1634 = vunpack.c.l.b16 %v603
    %v1635 = vunpack.c.l.b16 %v604
    %v1636 = vunpack.c.l.b16 %v605
    %v1637 = vunpack.c.l.b16 %v606
    %v1638 = vunpack.c.l.b16 %v607
    %v1639 = vunpack.c.l.b16 %v608
    %v1640 = vunpack.c.l.b16 %v609
    %v1641 = vunpack.c.l.b16 %v610
    %v1642 = vunpack.c.l.b16 %v611
    %v1643 = vunpack.c.l.b16 %v612
    %v1644 = vunpack.c.l.b16 %v613
    %v1645 = vunpack.c.l.b16 %v614
    %v1646 = vunpack.c.l.b16 %v615
    %v1647 = vunpack.c.l.b16 %v616
    %v1648 = vunpack.c.l.b16 %v617
    %v1649 = vunpack.c.l.b16 %v618
    %v1650 = vunpack.c.l.b16 %v619
    %v1651 = vunpack.c.l.b16 %v620
    %v1652 = vunpack.c.l.b16 %v621
    %v1653 = vunpack.c.l.b16 %v622
    %v1654 = vunpack.c.l.b16 %v623
    %v1655 = vunpack.c.l.b16 %v624
    %v1656 = vunpack.c.l.b16 %v625
    %v1657 = vunpack.c.l.b16 %v626
    %v1658 = vunpack.c.l.b16 %v627
    %v1659 = vunpack.c.l.b16 %v628
    %v1660 = vunpack.c.l.b16 %v629
    %v1661 = vunpack.c.l.b16 %v630
    %v1662 = vunpack.c.l.b16 %v631
    %v1663 = vunpack.c.l.b16 %v632
    %v1664 = vunpack.c.l.b16 %v633
    %v1665 = vunpack.c.l.b16 %v634
    %v1666 = vunpack.c.l.b16 %v635
    %v1667 = vunpack.c.l.b16 %v636
    %v1668 = vunpack.c.l.b16 %v637
    %v1669 = vunpack.c.l.b16 %v638
    %v1670 = vunpack.c.l.b16 %v639
    %v1671 = vunpack.c.l.b16 %v640
    %v1672 = vunpack.c.l.b16 %v641
    %v1673 = vunpack.c.l.b16 %v642
    %v1674 = vunpack.c.l.b16 %v643
    %v1675 = vunpack.c.l.b16 %v644
    %v1676 = vunpack.c.l.b16 %v645
    %v1677 = vunpack.c.l.b16 %v646
    %v1678 = vunpack.c.l.b16 %v647
    %v1679 = vunpack.c.l.b16 %v648
    %v1680 = vunpack.c.l.b16 %v649
    %v1681 = vunpack.c.l.b16 %v650
    %v1682 = vunpack.c.l.b16 %v651
    %v1683 = vunpack.c.l.b16 %v652
    %v1684 = vunpack.c.l.b16 %v653
    %v1685 = vunpack.c.l.b16 %v654
    %v1686 = vunpack.c.l.b16 %v655
    %v1687 = vunpack.c.l.b16 %v656
    %v1688 = vunpack.c.l.b16 %v657
    %v1689 = vunpack.c.l.b16 %v658
    %v1690 = vunpack.c.l.b16 %v659
    %v1691 = vunpack.c.l.b16 %v660
    %v1692 = vunpack.c.l.b16 %v661
    %v1693 = vunpack.c.l.b16 %v662
    %v1694 = vunpack.c.l.b16 %v663
    %v1695 = vunpack.c.l.b16 %v664
    %v1696 = vunpack.c.l.b16 %v665
    %v1697 = vunpack.c.l.b16 %v666
    %v1698 = vunpack.c.l.b16 %v667
    %v1699 = vunpack.c.l.b16 %v668
    %v1700 = vunpack.c.l.b16 %v669
    %v1701 = vunpack.c.l.b16 %v670
    %v1702 = vunpack.c.l.b16 %v671
    %v1703 = vunpack.c.l.b16 %v672
    %v1704 = vunpack.c.l.b16 %v673
    %v1705 = vunpack.c.l.b16 %v674
    %v1706 = vunpack.c.l.b16 %v675
    %v1707 = vunpack.c.l.b16 %v676
    %v1708 = vunpack.c.l.b16 %v677
    %v1709 = vunpack.c.l.b16 %v678
    %v1710 = vunpack.c.l.b16 %v679
    %v1711 = vunpack.c.l.b16 %v680
    %v1712 = vunpack.c.l.b16 %v681
    %v1713 = vunpack.c.l.b16 %v682
    %v1714 = vunpack.c.l.b16 %v683
    %v1715 = vunpack.c.l.b16 %v684
    %v1716 = vunpack.c.l.b16 %v685
    %v1717 = vunpack.c.l.b16 %v686
    %v1718 = vunpack.c.l.b16 %v687
    %v1719 = vunpack.c.l.b16 %v688
    %v1720 = vunpack.c.l.b16 %v689
    %v1721 = vunpack.c.l.b16 %v690
    %v1722 = vunpack.c.l.b16 %v691
    %v1723 = vunpack.c.l.b16 %v692
    %v1724 = vunpack.c.l.b16 %v693
    %v1725 = vunpack.c.l.b16 %v694
    %v1726 = vunpack.c.l.b16 %v695
    %v1727 = vunpack.c.l.b16 %v696
    %v1728 = vunpack.c.l.b16 %v697
    %v1729 = vunpack.c.l.b16 %v698
    %v1730 = vunpack.c.l.b16 %v699
    %v1731 = vunpack.c.l.b16 %v700
    %v1732 = vunpack.c.l.b16 %v701
    %v1733 = vunpack.c.l.b16 %v702
    %v1734 = vunpack.c.l.b16 %v703
    %v1735 = vunpack.c.l.b16 %v704
    %v1736 = vunpack.c.l.b16 %v705
    %v1737 = vunpack.c.l.b16 %v706
    %v1738 = vunpack.c.l.b16 %v707
    %v1739 = vunpack.c.l.b16 %v708
    %v1740 = vunpack.c.l.b16 %v709
    %v1741 = vunpack.c.l.b16 %v710
    %v1742 = vunpack.c.l.b16 %v711
    %v1743 = vunpack.c.l.b16 %v712
    %v1744 = vunpack.c.l.b16 %v713
    %v1745 = vunpack.c.l.b16 %v714
    %v1746 = vunpack.c.l.b16 %v715
    %v1747 = vunpack.c.l.b16 %v716
    %v1748 = vunpack.c.l.b16 %v717
    %v1749 = vunpack.c.l.b16 %v718
    %v1750 = vunpack.c.l.b16 %v719
    %v1751 = vunpack.c.l.b16 %v720
    %v1752 = vunpack.c.l.b16 %v721
    %v1753 = vunpack.c.l.b16 %v722
    %v1754 = vunpack.c.l.b16 %v723
    %v1755 = vunpack.c.l.b16 %v724
    %v1756 = vunpack.c.l.b16 %v725
    %v1757 = vunpack.c.l.b16 %v726
    %v1758 = vunpack.c.l.b16 %v727
    %v1759 = vunpack.c.l.b16 %v728
    %v1760 = vunpack.c.l.b16 %v729
    %v1761 = vunpack.c.l.b16 %v730
    %v1762 = vunpack.c.l.b16 %v731
    %v1763 = vunpack.c.l.b16 %v732
    %v1764 = vunpack.c.l.b16 %v733
    %v1765 = vunpack.c.l.b16 %v734
    %v1766 = vunpack.c.l.b16 %v735
    %v1767 = vunpack.c.l.b16 %v736
    %v1768 = vunpack.c.l.b16 %v737
    %v1769 = vunpack.c.l.b16 %v738
    %v1770 = vunpack.c.l.b16 %v739
    %v1771 = vunpack.c.l.b16 %v740
    %v1772 = vunpack.c.l.b16 %v741
    %v1773 = vunpack.c.l.b16 %v742
    %v1774 = vunpack.c.l.b16 %v743
    %v1775 = vunpack.c.l.b16 %v744
    %v1776 = vunpack.c.l.b16 %v745
    %v1777 = vunpack.c.l.b16 %v746
    %v1778 = vunpack.c.l.b16 %v747
    %v1779 = vunpack.c.l.b16 %v748
    %v1780 = vunpack.c.l.b16 %v749
    %v1781 = vunpack.c.l.b16 %v750
    %v1782 = vunpack.c.l.b16 %v751
    %v1783 = vunpack.c.l.b16 %v752
    %v1784 = vunpack.c.l.b16 %v753
    %v1785 = vunpack.c.l.b16 %v754
    %v1786 = vunpack.c.l.b16 %v755
    %v1787 = vunpack.c.l.b16 %v756
    %v1788 = vunpack.c.l.b16 %v757
    %v1789 = vpack.c.b16 %v1278, %v1277
    %v1790 = vpack.c.b16 %v1280, %v1279
    %v1791 = vpack.c.b16 %v1282, %v1281
    %v1792 = vpack.c.b16 %v1284, %v1283
    %v1793 = vpack.c.b16 %v1286, %v1285
    %v1794 = vpack.c.b16 %v1288, %v1287
    %v1795 = vpack.c.b16 %v1290, %v1289
    %v1796 = vpack.c.b16 %v1292, %v1291
    %v1797 = vpack.c.b16 %v1294, %v1293
    %v1798 = vpack.c.b16 %v1296, %v1295
    %v1799 = vpack.c.b16 %v1298, %v1297
    %v1800 = vpack.c.b16 %v1300, %v1299
    %v1801 = vpack.c.b16 %v1302, %v1301
    %v1802 = vpack.c.b16 %v1304, %v1303
    %v1803 = vpack.c.b16 %v1306, %v1305
    %v1804 = vpack.c.b16 %v1308, %v1307
    %v1805 = vpack.c.b16 %v1310, %v1309
    %v1806 = vpack.c.b16 %v1312, %v1311
    %v1807 = vpack.c.b16 %v1314, %v1313
    %v1808 = vpack.c.b16 %v1316, %v1315
    %v1809 = vpack.c.b16 %v1318, %v1317
    %v1810 = vpack.c.b16 %v1320, %v1319
    %v1811 = vpack.c.b16 %v1322, %v1321
    %v1812 = vpack.c.b16 %v1324, %v1323
    %v1813 = vpack.c.b16 %v1326, %v1325
    %v1814 = vpack.c.b16 %v1328, %v1327
    %v1815 = vpack.c.b16 %v1330, %v1329
    %v1816 = vpack.c.b16 %v1332, %v1331
    %v1817 = vpack.c.b16 %v1334, %v1333
    %v1818 = vpack.c.b16 %v1336, %v1335
    %v1819 = vpack.c.b16 %v1338, %v1337
    %v1820 = vpack.c.b16 %v1340, %v1339
    %v1821 = vpack.c.b16 %v1342, %v1341
    %v1822 = vpack.c.b16 %v1344, %v1343
    %v1823 = vpack.c.b16 %v1346, %v1345
    %v1824 = vpack.c.b16 %v1348, %v1347
    %v1825 = vpack.c.b16 %v1350, %v1349
    %v1826 = vpack.c.b16 %v1352, %v1351
    %v1827 = vpack.c.b16 %v1354, %v1353
    %v1828 = vpack.c.b16 %v1356, %v1355
    %v1829 = vpack.c.b16 %v1358, %v1357
    %v1830 = vpack.c.b16 %v1360, %v1359
    %v1831 = vpack.c.b16 %v1362, %v1361
    %v1832 = vpack.c.b16 %v1364, %v1363
    %v1833 = vpack.c.b16 %v1366, %v1365
    %v1834 = vpack.c.b16 %v1368, %v1367
    %v1835 = vpack.c.b16 %v1370, %v1369
    %v1836 = vpack.c.b16 %v1372, %v1371
    %v1837 = vpack.c.b16 %v1374, %v1373
    %v1838 = vpack.c.b16 %v1376, %v1375
    %v1839 = vpack.c.b16 %v1378, %v1377
    %v1840 = vpack.c.b16 %v1380, %v1379
    %v1841 = vpack.c.b16 %v1382, %v1381
    %v1842 = vpack.c.b16 %v1384, %v1383
    %v1843 = vpack.c.b16 %v1386, %v1385
    %v1844 = vpack.c.b16 %v1388, %v1387
    %v1845 = vpack.c.b16 %v1390, %v1389
    %v1846 = vpack.c.b16 %v1392, %v1391
    %v1847 = vpack.c.b16 %v1394, %v1393
    %v1848 = vpack.c.b16 %v1396, %v1395
    %v1849 = vpack.c.b16 %v1398, %v1397
    %v1850 = vpack.c.b16 %v1400, %v1399
    %v1851 = vpack.c.b16 %v1402, %v1401
    %v1852 = vpack.c.b16 %v1404, %v1403
    %v1853 = vpack.c.b16 %v1406, %v1405
    %v1854 = vpack.c.b16 %v1408, %v1407
    %v1855 = vpack.c.b16 %v1410, %v1409
    %v1856 = vpack.c.b16 %v1412, %v1411
    %v1857 = vpack.c.b16 %v1414, %v1413
    %v1858 = vpack.c.b16 %v1416, %v1415
    %v1859 = vpack.c.b16 %v1418, %v1417
    %v1860 = vpack.c.b16 %v1420, %v1419
    %v1861 = vpack.c.b16 %v1422, %v1421
    %v1862 = vpack.c.b16 %v1424, %v1423
    %v1863 = vpack.c.b16 %v1426, %v1425
    %v1864 = vpack.c.b16 %v1428, %v1427
    %v1865 = vpack.c.b16 %v1430, %v1429
    %v1866 = vpack.c.b16 %v1432, %v1431
    %v1867 = vpack.c.b16 %v1434, %v1433
    %v1868 = vpack.c.b16 %v1436, %v1435
    %v1869 = vpack.c.b16 %v1438, %v1437
    %v1870 = vpack.c.b16 %v1440, %v1439
    %v1871 = vpack.c.b16 %v1442, %v1441
    %v1872 = vpack.c.b16 %v1444, %v1443
    %v1873 = vpack.c.b16 %v1446, %v1445
    %v1874 = vpack.c.b16 %v1448, %v1447
    %v1875 = vpack.c.b16 %v1450, %v1449
    %v1876 = vpack.c.b16 %v1452, %v1451
    %v1877 = vpack.c.b16 %v1454, %v1453
    %v1878 = vpack.c.b16 %v1456, %v1455
    %v1879 = vpack.c.b16 %v1458, %v1457
    %v1880 = vpack.c.b16 %v1460, %v1459
    %v1881 = vpack.c.b16 %v1462, %v1461
    %v1882 = vpack.c.b16 %v1464, %v1463
    %v1883 = vpack.c.b16 %v1466, %v1465
    %v1884 = vpack.c.b16 %v1468, %v1467
    %v1885 = vpack.c.b16 %v1470, %v1469
    %v1886 = vpack.c.b16 %v1472, %v1471
    %v1887 = vpack.c.b16 %v1474, %v1473
    %v1888 = vpack.c.b16 %v1476, %v1475
    %v1889 = vpack.c.b16 %v1478, %v1477
    %v1890 = vpack.c.b16 %v1480, %v1479
    %v1891 = vpack.c.b16 %v1482, %v1481
    %v1892 = vpack.c.b16 %v1484, %v1483
    %v1893 = vpack.c.b16 %v1486, %v1485
    %v1894 = vpack.c.b16 %v1488, %v1487
    %v1895 = vpack.c.b16 %v1490, %v1489
    %v1896 = vpack.c.b16 %v1492, %v1491
    %v1897 = vpack.c.b16 %v1494, %v1493
    %v1898 = vpack.c.b16 %v1496, %v1495
    %v1899 = vpack.c.b16 %v1498, %v1497
    %v1900 = vpack.c.b16 %v1500, %v1499
    %v1901 = vpack.c.b16 %v1502, %v1501
    %v1902 = vpack.c.b16 %v1504, %v1503
    %v1903 = vpack.c.b16 %v1506, %v1505
    %v1904 = vpack.c.b16 %v1508, %v1507
    %v1905 = vpack.c.b16 %v1510, %v1509
    %v1906 = vpack.c.b16 %v1512, %v1511
    %v1907 = vpack.c.b16 %v1514, %v1513
    %v1908 = vpack.c.b16 %v1516, %v1515
    %v1909 = vpack.c.b16 %v1518, %v1517
    %v1910 = vpack.c.b16 %v1520, %v1519
    %v1911 = vpack.c.b16 %v1522, %v1521
    %v1912 = vpack.c.b16 %v1524, %v1523
    %v1913 = vpack.c.b16 %v1526, %v1525
    %v1914 = vpack.c.b16 %v1528, %v1527
    %v1915 = vpack.c.b16 %v1530, %v1529
    %v1916 = vpack.c.b16 %v1532, %v1531
    %v1917 = vpack.c.b16 %v1534, %v1533
    %v1918 = vpack.c.b16 %v1536, %v1535
    %v1919 = vpack.c.b16 %v1538, %v1537
    %v1920 = vpack.c.b16 %v1540, %v1539
    %v1921 = vpack.c.b16 %v1542, %v1541
    %v1922 = vpack.c.b16 %v1544, %v1543
    %v1923 = vpack.c.b16 %v1546, %v1545
    %v1924 = vpack.c.b16 %v1548, %v1547
    %v1925 = vpack.c.b16 %v1550, %v1549
    %v1926 = vpack.c.b16 %v1552, %v1551
    %v1927 = vpack.c.b16 %v1554, %v1553
    %v1928 = vpack.c.b16 %v1556, %v1555
    %v1929 = vpack.c.b16 %v1558, %v1557
    %v1930 = vpack.c.b16 %v1560, %v1559
    %v1931 = vpack.c.b16 %v1562, %v1561
    %v1932 = vpack.c.b16 %v1564, %v1563
    %v1933 = vpack.c.b16 %v1566, %v1565
    %v1934 = vpack.c.b16 %v1568, %v1567
    %v1935 = vpack.c.b16 %v1570, %v1569
    %v1936 = vpack.c.b16 %v1572, %v1571
    %v1937 = vpack.c.b16 %v1574, %v1573
    %v1938 = vpack.c.b16 %v1576, %v1575
    %v1939 = vpack.c.b16 %v1578, %v1577
    %v1940 = vpack.c.b16 %v1580, %v1579
    %v1941 = vpack.c.b16 %v1582, %v1581
    %v1942 = vpack.c.b16 %v1584, %v1583
    %v1943 = vpack.c.b16 %v1586, %v1585
    %v1944 = vpack.c.b16 %v1588, %v1587
    %v1945 = vpack.c.b16 %v1590, %v1589
    %v1946 = vpack.c.b16 %v1592, %v1591
    %v1947 = vpack.c.b16 %v1594, %v1593
    %v1948 = vpack.c.b16 %v1596, %v1595
    %v1949 = vpack.c.b16 %v1598, %v1597
    %v1950 = vpack.c.b16 %v1600, %v1599
    %v1951 = vpack.c.b16 %v1602, %v1601
    %v1952 = vpack.c.b16 %v1604, %v1603
    %v1953 = vpack.c.b16 %v1606, %v1605
    %v1954 = vpack.c.b16 %v1608, %v1607
    %v1955 = vpack.c.b16 %v1610, %v1609
    %v1956 = vpack.c.b16 %v1612, %v1611
    %v1957 = vpack.c.b16 %v1614, %v1613
    %v1958 = vpack.c.b16 %v1616, %v1615
    %v1959 = vpack.c.b16 %v1618, %v1617
    %v1960 = vpack.c.b16 %v1620, %v1619
    %v1961 = vpack.c.b16 %v1622, %v1621
    %v1962 = vpack.c.b16 %v1624, %v1623
    %v1963 = vpack.c.b16 %v1626, %v1625
    %v1964 = vpack.c.b16 %v1628, %v1627
    %v1965 = vpack.c.b16 %v1630, %v1629
    %v1966 = vpack.c.b16 %v1632, %v1631
    %v1967 = vpack.c.b16 %v1634, %v1633
    %v1968 = vpack.c.b16 %v1636, %v1635
    %v1969 = vpack.c.b16 %v1638, %v1637
    %v1970 = vpack.c.b16 %v1640, %v1639
    %v1971 = vpack.c.b16 %v1642, %v1641
    %v1972 = vpack.c.b16 %v1644, %v1643
    %v1973 = vpack.c.b16 %v1646, %v1645
    %v1974 = vpack.c.b16 %v1648, %v1647
    %v1975 = vpack.c.b16 %v1650, %v1649
    %v1976 = vpack.c.b16 %v1652, %v1651
    %v1977 = vpack.c.b16 %v1654, %v1653
    %v1978 = vpack.c.b16 %v1656, %v1655
    %v1979 = vpack.c.b16 %v1658, %v1657
    %v1980 = vpack.c.b16 %v1660, %v1659
    %v1981 = vpack.c.b16 %v1662, %v1661
    %v1982 = vpack.c.b16 %v1664, %v1663
    %v1983 = vpack.c.b16 %v1666, %v1665
    %v1984 = vpack.c.b16 %v1668, %v1667
    %v1985 = vpack.c.b16 %v1670, %v1669
    %v1986 = vpack.c.b16 %v1672, %v1671
    %v1987 = vpack.c.b16 %v1674, %v1673
    %v1988 = vpack.c.b16 %v1676, %v1675
    %v1989 = vpack.c.b16 %v1678, %v1677
    %v1990 = vpack.c.b16 %v1680, %v1679
    %v1991 = vpack.c.b16 %v1682, %v1681
    %v1992 = vpack.c.b16 %v1684, %v1683
    %v1993 = vpack.c.b16 %v1686, %v1685
    %v1994 = vpack.c.b16 %v1688, %v1687
    %v1995 = vpack.c.b16 %v1690, %v1689
    %v1996 = vpack.c.b16 %v1692, %v1691
    %v1997 = vpack.c.b16 %v1694, %v1693
    %v1998 = vpack.c.b16 %v1696, %v1695
    %v1999 = vpack.c.b16 %v1698, %v1697
    %v2000 = vpack.c.b16 %v1700, %v1699
    %v2001 = vpack.c.b16 %v1702, %v1701
    %v2002 = vpack.c.b16 %v1704, %v1703
    %v2003 = vpack.c.b16 %v1706, %v1705
    %v2004 = vpack.c.b16 %v1708, %v1707
    %v2005 = vpack.c.b16 %v1710, %v1709
    %v2006 = vpack.c.b16 %v1712, %v1711
    %v2007 = vpack.c.b16 %v1714, %v1713
    %v2008 = vpack.c.b16 %v1716, %v1715
    %v2009 = vpack.c.b16 %v1718, %v1717
    %v2010 = vpack.c.b16 %v1720, %v1719
    %v2011 = vpack.c.b16 %v1722, %v1721
    %v2012 = vpack.c.b16 %v1724, %v1723
    %v2013 = vpack.c.b16 %v1726, %v1725
    %v2014 = vpack.c.b16 %v1728, %v1727
    %v2015 = vpack.c.b16 %v1730, %v1729
    %v2016 = vpack.c.b16 %v1732, %v1731
    %v2017 = vpack.c.b16 %v1734, %v1733
    %v2018 = vpack.c.b16 %v1736, %v1735
    %v2019 = vpack.c.b16 %v1738, %v1737
    %v2020 = vpack.c.b16 %v1740, %v1739
    %v2021 = vpack.c.b16 %v1742, %v1741
    %v2022 = vpack.c.b16 %v1744, %v1743
    %v2023 = vpack.c.b16 %v1746, %v1745
    %v2024 = vpack.c.b16 %v1748, %v1747
    %v2025 = vpack.c.b16 %v1750, %v1749
    %v2026 = vpack.c.b16 %v1752, %v1751
    %v2027 = vpack.c.b16 %v1754, %v1753
    %v2028 = vpack.c.b16 %v1756, %v1755
    %v2029 = vpack.c.b16 %v1758, %v1757
    %v2030 = vpack.c.b16 %v1760, %v1759
    %v2031 = vpack.c.b16 %v1762, %v1761
    %v2032 = vpack.c.b16 %v1764, %v1763
    %v2033 = vpack.c.b16 %v1766, %v1765
    %v2034 = vpack.c.b16 %v1768, %v1767
    %v2035 = vpack.c.b16 %v1770, %v1769
    %v2036 = vpack.c.b16 %v1772, %v1771
    %v2037 = vpack.c.b16 %v1774, %v1773
    %v2038 = vpack.c.b16 %v1776, %v1775
    %v2039 = vpack.c.b16 %v1778, %v1777
    %v2040 = vpack.c.b16 %v1780, %v1779
    %v2041 = vpack.c.b16 %v1782, %v1781
    %v2042 = vpack.c.b16 %v1784, %v1783
    %v2043 = vpack.c.b16 %v1786, %v1785
    %v2044 = vpack.c.b16 %v1788, %v1787
    %2301 = vmatprep.subr.bf16.mxu0 0
    %2302 = vmatpush1.bf16.msra.mxu0 %v1789
    %2303 = vmatprep.subr.bf16.mxu0 0
    %2304 = vmatpush1.bf16.msra.mxu0 %v1790
    %2305 = vmatprep.subr.bf16.mxu0 0
    %2306 = vmatpush1.bf16.msra.mxu0 %v1791
    %2307 = vmatprep.subr.bf16.mxu0 0
    %2308 = vmatpush1.bf16.msra.mxu0 %v1792
    %2309 = vmatprep.subr.bf16.mxu0 0
    %2310 = vmatpush1.bf16.msra.mxu0 %v1793
    %2311 = vmatprep.subr.bf16.mxu0 0
    %2312 = vmatpush1.bf16.msra.mxu0 %v1794
    %2313 = vmatprep.subr.bf16.mxu0 0
    %2314 = vmatpush1.bf16.msra.mxu0 %v1795
    %2315 = vmatprep.subr.bf16.mxu0 0
    %2316 = vmatpush1.bf16.msra.mxu0 %v1796
    %2317 = vmatprep.subr.bf16.mxu0 0
    %2318 = vmatpush1.bf16.msra.mxu0 %v1797
    %2319 = vmatprep.subr.bf16.mxu0 0
    %2320 = vmatpush1.bf16.msra.mxu0 %v1798
    %2321 = vmatprep.subr.bf16.mxu0 0
    %2322 = vmatpush1.bf16.msra.mxu0 %v1799
    %2323 = vmatprep.subr.bf16.mxu0 0
    %2324 = vmatpush1.bf16.msra.mxu0 %v1800
    %2325 = vmatprep.subr.bf16.mxu0 0
    %2326 = vmatpush1.bf16.msra.mxu0 %v1801
    %2327 = vmatprep.subr.bf16.mxu0 0
    %2328 = vmatpush1.bf16.msra.mxu0 %v1802
    %2329 = vmatprep.subr.bf16.mxu0 0
    %2330 = vmatpush1.bf16.msra.mxu0 %v1803
    %2331 = vmatprep.subr.bf16.mxu0 0
    %2332 = vmatpush1.bf16.msra.mxu0 %v1804
    %2333 = vmatprep.mubr.bf16.mxu0 %v215
    %2334 = vmatmul.mubr.bf16.gmra.mrb[0].mxu0 %v214
    %v2335 = vpop.f32.mrb[0].mxu0
    %v2336 = vadd.f32 %v763, %v2335
    %v2337 = vpop.f32.mrb[0].mxu0
    %v2338 = vpop.f32.mrb[0].mxu0
    %v2339 = vpop.f32.mrb[0].mxu0
    %2340 = vdwg.mxu0
    %2341 = vmatprep.subr.bf16.mxu0 0
    %2342 = vmatpush1.bf16.msra.mxu0 %v1805
    %2343 = vmatprep.subr.bf16.mxu0 0
    %2344 = vmatpush1.bf16.msra.mxu0 %v1806
    %2345 = vmatprep.subr.bf16.mxu0 0
    %2346 = vmatpush1.bf16.msra.mxu0 %v1807
    %2347 = vmatprep.subr.bf16.mxu0 0
    %2348 = vmatpush1.bf16.msra.mxu0 %v1808
    %2349 = vmatprep.subr.bf16.mxu0 0
    %2350 = vmatpush1.bf16.msra.mxu0 %v1809
    %2351 = vmatprep.subr.bf16.mxu0 0
    %2352 = vmatpush1.bf16.msra.mxu0 %v1810
    %2353 = vmatprep.subr.bf16.mxu0 0
    %2354 = vmatpush1.bf16.msra.mxu0 %v1811
    %2355 = vmatprep.subr.bf16.mxu0 0
    %2356 = vmatpush1.bf16.msra.mxu0 %v1812
    %2357 = vmatprep.subr.bf16.mxu0 0
    %2358 = vmatpush1.bf16.msra.mxu0 %v1813
    %2359 = vmatprep.subr.bf16.mxu0 0
    %2360 = vmatpush1.bf16.msra.mxu0 %v1814
    %2361 = vmatprep.subr.bf16.mxu0 0
    %2362 = vmatpush1.bf16.msra.mxu0 %v1815
    %2363 = vmatprep.subr.bf16.mxu0 0
    %2364 = vmatpush1.bf16.msra.mxu0 %v1816
    %2365 = vmatprep.subr.bf16.mxu0 0
    %2366 = vmatpush1.bf16.msra.mxu0 %v1817
    %2367 = vmatprep.subr.bf16.mxu0 0
    %2368 = vmatpush1.bf16.msra.mxu0 %v1818
    %2369 = vmatprep.subr.bf16.mxu0 0
    %2370 = vmatpush1.bf16.msra.mxu0 %v1819
    %2371 = vmatprep.subr.bf16.mxu0 0
    %2372 = vmatpush1.bf16.msra.mxu0 %v1820
    %2373 = vmatprep.mubr.bf16.mxu0 %v217
    %2374 = vmatmul.mubr.bf16.gmra.mrb[0].mxu0 %v216
    %v2375 = vpop.f32.mrb[0].mxu0
    %v2376 = vadd.f32 %v2336, %v2375
    %v2377 = vpop.f32.mrb[0].mxu0
    %v2378 = vpop.f32.mrb[0].mxu0
    %v2379 = vpop.f32.mrb[0].mxu0
    %2380 = vdwg.mxu0
    %2381 = vmatprep.subr.bf16.mxu0 0
    %2382 = vmatpush1.bf16.msra.mxu0 %v1821
    %2383 = vmatprep.subr.bf16.mxu0 0
    %2384 = vmatpush1.bf16.msra.mxu0 %v1822
    %2385 = vmatprep.subr.bf16.mxu0 0
    %2386 = vmatpush1.bf16.msra.mxu0 %v1823
    %2387 = vmatprep.subr.bf16.mxu0 0
    %2388 = vmatpush1.bf16.msra.mxu0 %v1824
    %2389 = vmatprep.subr.bf16.mxu0 0
    %2390 = vmatpush1.bf16.msra.mxu0 %v1825
    %2391 = vmatprep.subr.bf16.mxu0 0
    %2392 = vmatpush1.bf16.msra.mxu0 %v1826
    %2393 = vmatprep.subr.bf16.mxu0 0
    %2394 = vmatpush1.bf16.msra.mxu0 %v1827
    %2395 = vmatprep.subr.bf16.mxu0 0
    %2396 = vmatpush1.bf16.msra.mxu0 %v1828
    %2397 = vmatprep.subr.bf16.mxu0 0
    %2398 = vmatpush1.bf16.msra.mxu0 %v1829
    %2399 = vmatprep.subr.bf16.mxu0 0
    %2400 = vmatpush1.bf16.msra.mxu0 %v1830
    %2401 = vmatprep.subr.bf16.mxu0 0
    %2402 = vmatpush1.bf16.msra.mxu0 %v1831
    %2403 = vmatprep.subr.bf16.mxu0 0
    %2404 = vmatpush1.bf16.msra.mxu0 %v1832
    %2405 = vmatprep.subr.bf16.mxu0 0
    %2406 = vmatpush1.bf16.msra.mxu0 %v1833
    %2407 = vmatprep.subr.bf16.mxu0 0
    %2408 = vmatpush1.bf16.msra.mxu0 %v1834
    %2409 = vmatprep.subr.bf16.mxu0 0
    %2410 = vmatpush1.bf16.msra.mxu0 %v1835
    %2411 = vmatprep.subr.bf16.mxu0 0
    %2412 = vmatpush1.bf16.msra.mxu0 %v1836
    %2413 = vmatprep.mubr.bf16.mxu0 %v219
    %2414 = vmatmul.mubr.bf16.gmra.mrb[0].mxu0 %v218
    %v2415 = vpop.f32.mrb[0].mxu0
    %v2416 = vadd.f32 %v2376, %v2415
    %v2417 = vpop.f32.mrb[0].mxu0
    %v2418 = vpop.f32.mrb[0].mxu0
    %v2419 = vpop.f32.mrb[0].mxu0
    %2420 = vdwg.mxu0
    %2421 = vmatprep.subr.bf16.mxu0 0
    %2422 = vmatpush1.bf16.msra.mxu0 %v1837
    %2423 = vmatprep.subr.bf16.mxu0 0
    %2424 = vmatpush1.bf16.msra.mxu0 %v1838
    %2425 = vmatprep.subr.bf16.mxu0 0
    %2426 = vmatpush1.bf16.msra.mxu0 %v1839
    %2427 = vmatprep.subr.bf16.mxu0 0
    %2428 = vmatpush1.bf16.msra.mxu0 %v1840
    %2429 = vmatprep.subr.bf16.mxu0 0
    %2430 = vmatpush1.bf16.msra.mxu0 %v1841
    %2431 = vmatprep.subr.bf16.mxu0 0
    %2432 = vmatpush1.bf16.msra.mxu0 %v1842
    %2433 = vmatprep.subr.bf16.mxu0 0
    %2434 = vmatpush1.bf16.msra.mxu0 %v1843
    %2435 = vmatprep.subr.bf16.mxu0 0
    %2436 = vmatpush1.bf16.msra.mxu0 %v1844
    %2437 = vmatprep.subr.bf16.mxu0 0
    %2438 = vmatpush1.bf16.msra.mxu0 %v1845
    %2439 = vmatprep.subr.bf16.mxu0 0
    %2440 = vmatpush1.bf16.msra.mxu0 %v1846
    %2441 = vmatprep.subr.bf16.mxu0 0
    %2442 = vmatpush1.bf16.msra.mxu0 %v1847
    %2443 = vmatprep.subr.bf16.mxu0 0
    %2444 = vmatpush1.bf16.msra.mxu0 %v1848
    %2445 = vmatprep.subr.bf16.mxu0 0
    %2446 = vmatpush1.bf16.msra.mxu0 %v1849
    %2447 = vmatprep.subr.bf16.mxu0 0
    %2448 = vmatpush1.bf16.msra.mxu0 %v1850
    %2449 = vmatprep.subr.bf16.mxu0 0
    %2450 = vmatpush1.bf16.msra.mxu0 %v1851
    %2451 = vmatprep.subr.bf16.mxu0 0
    %2452 = vmatpush1.bf16.msra.mxu0 %v1852
    %2453 = vmatprep.mubr.bf16.mxu0 %v221
    %2454 = vmatmul.mubr.bf16.gmra.mrb[0].mxu0 %v220
    %v2455 = vpop.f32.mrb[0].mxu0
    %v2456 = vadd.f32 %v2416, %v2455
    %v2457 = vpop.f32.mrb[0].mxu0
    %v2458 = vpop.f32.mrb[0].mxu0
    %v2459 = vpop.f32.mrb[0].mxu0
    %2460 = vdwg.mxu0
    %2461 = vmatprep.subr.bf16.mxu0 0
    %2462 = vmatpush1.bf16.msra.mxu0 %v1853
    %2463 = vmatprep.subr.bf16.mxu0 0
    %2464 = vmatpush1.bf16.msra.mxu0 %v1854
    %2465 = vmatprep.subr.bf16.mxu0 0
    %2466 = vmatpush1.bf16.msra.mxu0 %v1855
    %2467 = vmatprep.subr.bf16.mxu0 0
    %2468 = vmatpush1.bf16.msra.mxu0 %v1856
    %2469 = vmatprep.subr.bf16.mxu0 0
    %2470 = vmatpush1.bf16.msra.mxu0 %v1857
    %2471 = vmatprep.subr.bf16.mxu0 0
    %2472 = vmatpush1.bf16.msra.mxu0 %v1858
    %2473 = vmatprep.subr.bf16.mxu0 0
    %2474 = vmatpush1.bf16.msra.mxu0 %v1859
    %2475 = vmatprep.subr.bf16.mxu0 0
    %2476 = vmatpush1.bf16.msra.mxu0 %v1860
    %2477 = vmatprep.subr.bf16.mxu0 0
    %2478 = vmatpush1.bf16.msra.mxu0 %v1861
    %2479 = vmatprep.subr.bf16.mxu0 0
    %2480 = vmatpush1.bf16.msra.mxu0 %v1862
    %2481 = vmatprep.subr.bf16.mxu0 0
    %2482 = vmatpush1.bf16.msra.mxu0 %v1863
    %2483 = vmatprep.subr.bf16.mxu0 0
    %2484 = vmatpush1.bf16.msra.mxu0 %v1864
    %2485 = vmatprep.subr.bf16.mxu0 0
    %2486 = vmatpush1.bf16.msra.mxu0 %v1865
    %2487 = vmatprep.subr.bf16.mxu0 0
    %2488 = vmatpush1.bf16.msra.mxu0 %v1866
    %2489 = vmatprep.subr.bf16.mxu0 0
    %2490 = vmatpush1.bf16.msra.mxu0 %v1867
    %2491 = vmatprep.subr.bf16.mxu0 0
    %2492 = vmatpush1.bf16.msra.mxu0 %v1868
    %2493 = vmatprep.mubr.bf16.mxu0 %v223
    %2494 = vmatmul.mubr.bf16.gmra.mrb[0].mxu0 %v222
    %v2495 = vpop.f32.mrb[0].mxu0
    %v2496 = vadd.f32 %v2456, %v2495
    %v2497 = vpop.f32.mrb[0].mxu0
    %v2498 = vpop.f32.mrb[0].mxu0
    %v2499 = vpop.f32.mrb[0].mxu0
    %2500 = vdwg.mxu0
    %2501 = vmatprep.subr.bf16.mxu0 0
    %2502 = vmatpush1.bf16.msra.mxu0 %v1869
    %2503 = vmatprep.subr.bf16.mxu0 0
    %2504 = vmatpush1.bf16.msra.mxu0 %v1870
    %2505 = vmatprep.subr.bf16.mxu0 0
    %2506 = vmatpush1.bf16.msra.mxu0 %v1871
    %2507 = vmatprep.subr.bf16.mxu0 0
    %2508 = vmatpush1.bf16.msra.mxu0 %v1872
    %2509 = vmatprep.subr.bf16.mxu0 0
    %2510 = vmatpush1.bf16.msra.mxu0 %v1873
    %2511 = vmatprep.subr.bf16.mxu0 0
    %2512 = vmatpush1.bf16.msra.mxu0 %v1874
    %2513 = vmatprep.subr.bf16.mxu0 0
    %2514 = vmatpush1.bf16.msra.mxu0 %v1875
    %2515 = vmatprep.subr.bf16.mxu0 0
    %2516 = vmatpush1.bf16.msra.mxu0 %v1876
    %2517 = vmatprep.subr.bf16.mxu0 0
    %2518 = vmatpush1.bf16.msra.mxu0 %v1877
    %2519 = vmatprep.subr.bf16.mxu0 0
    %2520 = vmatpush1.bf16.msra.mxu0 %v1878
    %2521 = vmatprep.subr.bf16.mxu0 0
    %2522 = vmatpush1.bf16.msra.mxu0 %v1879
    %2523 = vmatprep.subr.bf16.mxu0 0
    %2524 = vmatpush1.bf16.msra.mxu0 %v1880
    %2525 = vmatprep.subr.bf16.mxu0 0
    %2526 = vmatpush1.bf16.msra.mxu0 %v1881
    %2527 = vmatprep.subr.bf16.mxu0 0
    %2528 = vmatpush1.bf16.msra.mxu0 %v1882
    %2529 = vmatprep.subr.bf16.mxu0 0
    %2530 = vmatpush1.bf16.msra.mxu0 %v1883
    %2531 = vmatprep.subr.bf16.mxu0 0
    %2532 = vmatpush1.bf16.msra.mxu0 %v1884
    %2533 = vmatprep.mubr.bf16.mxu0 %v225
    %2534 = vmatmul.mubr.bf16.gmra.mrb[0].mxu0 %v224
    %v2535 = vpop.f32.mrb[0].mxu0
    %v2536 = vadd.f32 %v2496, %v2535
    %v2537 = vpop.f32.mrb[0].mxu0
    %v2538 = vpop.f32.mrb[0].mxu0
    %v2539 = vpop.f32.mrb[0].mxu0
    %2540 = vdwg.mxu0
    %2541 = vmatprep.subr.bf16.mxu0 0
    %2542 = vmatpush1.bf16.msra.mxu0 %v1885
    %2543 = vmatprep.subr.bf16.mxu0 0
    %2544 = vmatpush1.bf16.msra.mxu0 %v1886
    %2545 = vmatprep.subr.bf16.mxu0 0
    %2546 = vmatpush1.bf16.msra.mxu0 %v1887
    %2547 = vmatprep.subr.bf16.mxu0 0
    %2548 = vmatpush1.bf16.msra.mxu0 %v1888
    %2549 = vmatprep.subr.bf16.mxu0 0
    %2550 = vmatpush1.bf16.msra.mxu0 %v1889
    %2551 = vmatprep.subr.bf16.mxu0 0
    %2552 = vmatpush1.bf16.msra.mxu0 %v1890
    %2553 = vmatprep.subr.bf16.mxu0 0
    %2554 = vmatpush1.bf16.msra.mxu0 %v1891
    %2555 = vmatprep.subr.bf16.mxu0 0
    %2556 = vmatpush1.bf16.msra.mxu0 %v1892
    %2557 = vmatprep.subr.bf16.mxu0 0
    %2558 = vmatpush1.bf16.msra.mxu0 %v1893
    %2559 = vmatprep.subr.bf16.mxu0 0
    %2560 = vmatpush1.bf16.msra.mxu0 %v1894
    %2561 = vmatprep.subr.bf16.mxu0 0
    %2562 = vmatpush1.bf16.msra.mxu0 %v1895
    %2563 = vmatprep.subr.bf16.mxu0 0
    %2564 = vmatpush1.bf16.msra.mxu0 %v1896
    %2565 = vmatprep.subr.bf16.mxu0 0
    %2566 = vmatpush1.bf16.msra.mxu0 %v1897
    %2567 = vmatprep.subr.bf16.mxu0 0
    %2568 = vmatpush1.bf16.msra.mxu0 %v1898
    %2569 = vmatprep.subr.bf16.mxu0 0
    %2570 = vmatpush1.bf16.msra.mxu0 %v1899
    %2571 = vmatprep.subr.bf16.mxu0 0
    %2572 = vmatpush1.bf16.msra.mxu0 %v1900
    %2573 = vmatprep.mubr.bf16.mxu0 %v227
    %2574 = vmatmul.mubr.bf16.gmra.mrb[0].mxu0 %v226
    %v2575 = vpop.f32.mrb[0].mxu0
    %v2576 = vadd.f32 %v2536, %v2575
    %v2577 = vpop.f32.mrb[0].mxu0
    %v2578 = vpop.f32.mrb[0].mxu0
    %v2579 = vpop.f32.mrb[0].mxu0
    %2580 = vdwg.mxu0
    %2581 = vmatprep.subr.bf16.mxu0 0
    %2582 = vmatpush1.bf16.msra.mxu0 %v1901
    %2583 = vmatprep.subr.bf16.mxu0 0
    %2584 = vmatpush1.bf16.msra.mxu0 %v1902
    %2585 = vmatprep.subr.bf16.mxu0 0
    %2586 = vmatpush1.bf16.msra.mxu0 %v1903
    %2587 = vmatprep.subr.bf16.mxu0 0
    %2588 = vmatpush1.bf16.msra.mxu0 %v1904
    %2589 = vmatprep.subr.bf16.mxu0 0
    %2590 = vmatpush1.bf16.msra.mxu0 %v1905
    %2591 = vmatprep.subr.bf16.mxu0 0
    %2592 = vmatpush1.bf16.msra.mxu0 %v1906
    %2593 = vmatprep.subr.bf16.mxu0 0
    %2594 = vmatpush1.bf16.msra.mxu0 %v1907
    %2595 = vmatprep.subr.bf16.mxu0 0
    %2596 = vmatpush1.bf16.msra.mxu0 %v1908
    %2597 = vmatprep.subr.bf16.mxu0 0
    %2598 = vmatpush1.bf16.msra.mxu0 %v1909
    %2599 = vmatprep.subr.bf16.mxu0 0
    %2600 = vmatpush1.bf16.msra.mxu0 %v1910
    %2601 = vmatprep.subr.bf16.mxu0 0
    %2602 = vmatpush1.bf16.msra.mxu0 %v1911
    %2603 = vmatprep.subr.bf16.mxu0 0
    %2604 = vmatpush1.bf16.msra.mxu0 %v1912
    %2605 = vmatprep.subr.bf16.mxu0 0
    %2606 = vmatpush1.bf16.msra.mxu0 %v1913
    %2607 = vmatprep.subr.bf16.mxu0 0
    %2608 = vmatpush1.bf16.msra.mxu0 %v1914
    %2609 = vmatprep.subr.bf16.mxu0 0
    %2610 = vmatpush1.bf16.msra.mxu0 %v1915
    %2611 = vmatprep.subr.bf16.mxu0 0
    %2612 = vmatpush1.bf16.msra.mxu0 %v1916
    %2613 = vmatprep.mubr.bf16.mxu0 %v229
    %2614 = vmatmul.mubr.bf16.gmra.mrb[0].mxu0 %v228
    %v2615 = vpop.f32.mrb[0].mxu0
    %v2616 = vadd.f32 %v2576, %v2615
    %v2617 = vpop.f32.mrb[0].mxu0
    %v2618 = vpop.f32.mrb[0].mxu0
    %v2619 = vpop.f32.mrb[0].mxu0
    %2620 = vdwg.mxu0
    %2621 = vmatprep.subr.bf16.mxu0 0
    %2622 = vmatpush1.bf16.msra.mxu0 %v1917
    %2623 = vmatprep.subr.bf16.mxu0 0
    %2624 = vmatpush1.bf16.msra.mxu0 %v1918
    %2625 = vmatprep.subr.bf16.mxu0 0
    %2626 = vmatpush1.bf16.msra.mxu0 %v1919
    %2627 = vmatprep.subr.bf16.mxu0 0
    %2628 = vmatpush1.bf16.msra.mxu0 %v1920
    %2629 = vmatprep.subr.bf16.mxu0 0
    %2630 = vmatpush1.bf16.msra.mxu0 %v1921
    %2631 = vmatprep.subr.bf16.mxu0 0
    %2632 = vmatpush1.bf16.msra.mxu0 %v1922
    %2633 = vmatprep.subr.bf16.mxu0 0
    %2634 = vmatpush1.bf16.msra.mxu0 %v1923
    %2635 = vmatprep.subr.bf16.mxu0 0
    %2636 = vmatpush1.bf16.msra.mxu0 %v1924
    %2637 = vmatprep.subr.bf16.mxu0 0
    %2638 = vmatpush1.bf16.msra.mxu0 %v1925
    %2639 = vmatprep.subr.bf16.mxu0 0
    %2640 = vmatpush1.bf16.msra.mxu0 %v1926
    %2641 = vmatprep.subr.bf16.mxu0 0
    %2642 = vmatpush1.bf16.msra.mxu0 %v1927
    %2643 = vmatprep.subr.bf16.mxu0 0
    %2644 = vmatpush1.bf16.msra.mxu0 %v1928
    %2645 = vmatprep.subr.bf16.mxu0 0
    %2646 = vmatpush1.bf16.msra.mxu0 %v1929
    %2647 = vmatprep.subr.bf16.mxu0 0
    %2648 = vmatpush1.bf16.msra.mxu0 %v1930
    %2649 = vmatprep.subr.bf16.mxu0 0
    %2650 = vmatpush1.bf16.msra.mxu0 %v1931
    %2651 = vmatprep.subr.bf16.mxu0 0
    %2652 = vmatpush1.bf16.msra.mxu0 %v1932
    %2653 = vmatprep.mubr.bf16.mxu0 %v231
    %2654 = vmatmul.mubr.bf16.gmra.mrb[0].mxu0 %v230
    %v2655 = vpop.f32.mrb[0].mxu0
    %v2656 = vadd.f32 %v2616, %v2655
    %v2657 = vpop.f32.mrb[0].mxu0
    %v2658 = vpop.f32.mrb[0].mxu0
    %v2659 = vpop.f32.mrb[0].mxu0
    %2660 = vdwg.mxu0
    %2661 = vmatprep.subr.bf16.mxu0 0
    %2662 = vmatpush1.bf16.msra.mxu0 %v1933
    %2663 = vmatprep.subr.bf16.mxu0 0
    %2664 = vmatpush1.bf16.msra.mxu0 %v1934
    %2665 = vmatprep.subr.bf16.mxu0 0
    %2666 = vmatpush1.bf16.msra.mxu0 %v1935
    %2667 = vmatprep.subr.bf16.mxu0 0
    %2668 = vmatpush1.bf16.msra.mxu0 %v1936
    %2669 = vmatprep.subr.bf16.mxu0 0
    %2670 = vmatpush1.bf16.msra.mxu0 %v1937
    %2671 = vmatprep.subr.bf16.mxu0 0
    %2672 = vmatpush1.bf16.msra.mxu0 %v1938
    %2673 = vmatprep.subr.bf16.mxu0 0
    %2674 = vmatpush1.bf16.msra.mxu0 %v1939
    %2675 = vmatprep.subr.bf16.mxu0 0
    %2676 = vmatpush1.bf16.msra.mxu0 %v1940
    %2677 = vmatprep.subr.bf16.mxu0 0
    %2678 = vmatpush1.bf16.msra.mxu0 %v1941
    %2679 = vmatprep.subr.bf16.mxu0 0
    %2680 = vmatpush1.bf16.msra.mxu0 %v1942
    %2681 = vmatprep.subr.bf16.mxu0 0
    %2682 = vmatpush1.bf16.msra.mxu0 %v1943
    %2683 = vmatprep.subr.bf16.mxu0 0
    %2684 = vmatpush1.bf16.msra.mxu0 %v1944
    %2685 = vmatprep.subr.bf16.mxu0 0
    %2686 = vmatpush1.bf16.msra.mxu0 %v1945
    %2687 = vmatprep.subr.bf16.mxu0 0
    %2688 = vmatpush1.bf16.msra.mxu0 %v1946
    %2689 = vmatprep.subr.bf16.mxu0 0
    %2690 = vmatpush1.bf16.msra.mxu0 %v1947
    %2691 = vmatprep.subr.bf16.mxu0 0
    %2692 = vmatpush1.bf16.msra.mxu0 %v1948
    %2693 = vmatprep.mubr.bf16.mxu0 %v233
    %2694 = vmatmul.mubr.bf16.gmra.mrb[0].mxu0 %v232
    %v2695 = vpop.f32.mrb[0].mxu0
    %v2696 = vadd.f32 %v2656, %v2695
    %v2697 = vpop.f32.mrb[0].mxu0
    %v2698 = vpop.f32.mrb[0].mxu0
    %v2699 = vpop.f32.mrb[0].mxu0
    %2700 = vdwg.mxu0
    %2701 = vmatprep.subr.bf16.mxu0 0
    %2702 = vmatpush1.bf16.msra.mxu0 %v1949
    %2703 = vmatprep.subr.bf16.mxu0 0
    %2704 = vmatpush1.bf16.msra.mxu0 %v1950
    %2705 = vmatprep.subr.bf16.mxu0 0
    %2706 = vmatpush1.bf16.msra.mxu0 %v1951
    %2707 = vmatprep.subr.bf16.mxu0 0
    %2708 = vmatpush1.bf16.msra.mxu0 %v1952
    %2709 = vmatprep.subr.bf16.mxu0 0
    %2710 = vmatpush1.bf16.msra.mxu0 %v1953
    %2711 = vmatprep.subr.bf16.mxu0 0
    %2712 = vmatpush1.bf16.msra.mxu0 %v1954
    %2713 = vmatprep.subr.bf16.mxu0 0
    %2714 = vmatpush1.bf16.msra.mxu0 %v1955
    %2715 = vmatprep.subr.bf16.mxu0 0
    %2716 = vmatpush1.bf16.msra.mxu0 %v1956
    %2717 = vmatprep.subr.bf16.mxu0 0
    %2718 = vmatpush1.bf16.msra.mxu0 %v1957
    %2719 = vmatprep.subr.bf16.mxu0 0
    %2720 = vmatpush1.bf16.msra.mxu0 %v1958
    %2721 = vmatprep.subr.bf16.mxu0 0
    %2722 = vmatpush1.bf16.msra.mxu0 %v1959
    %2723 = vmatprep.subr.bf16.mxu0 0
    %2724 = vmatpush1.bf16.msra.mxu0 %v1960
    %2725 = vmatprep.subr.bf16.mxu0 0
    %2726 = vmatpush1.bf16.msra.mxu0 %v1961
    %2727 = vmatprep.subr.bf16.mxu0 0
    %2728 = vmatpush1.bf16.msra.mxu0 %v1962
    %2729 = vmatprep.subr.bf16.mxu0 0
    %2730 = vmatpush1.bf16.msra.mxu0 %v1963
    %2731 = vmatprep.subr.bf16.mxu0 0
    %2732 = vmatpush1.bf16.msra.mxu0 %v1964
    %2733 = vmatprep.mubr.bf16.mxu0 %v235
    %2734 = vmatmul.mubr.bf16.gmra.mrb[0].mxu0 %v234
    %v2735 = vpop.f32.mrb[0].mxu0
    %v2736 = vadd.f32 %v2696, %v2735
    %v2737 = vpop.f32.mrb[0].mxu0
    %v2738 = vpop.f32.mrb[0].mxu0
    %v2739 = vpop.f32.mrb[0].mxu0
    %2740 = vdwg.mxu0
    %2741 = vmatprep.subr.bf16.mxu0 0
    %2742 = vmatpush1.bf16.msra.mxu0 %v1965
    %2743 = vmatprep.subr.bf16.mxu0 0
    %2744 = vmatpush1.bf16.msra.mxu0 %v1966
    %2745 = vmatprep.subr.bf16.mxu0 0
    %2746 = vmatpush1.bf16.msra.mxu0 %v1967
    %2747 = vmatprep.subr.bf16.mxu0 0
    %2748 = vmatpush1.bf16.msra.mxu0 %v1968
    %2749 = vmatprep.subr.bf16.mxu0 0
    %2750 = vmatpush1.bf16.msra.mxu0 %v1969
    %2751 = vmatprep.subr.bf16.mxu0 0
    %2752 = vmatpush1.bf16.msra.mxu0 %v1970
    %2753 = vmatprep.subr.bf16.mxu0 0
    %2754 = vmatpush1.bf16.msra.mxu0 %v1971
    %2755 = vmatprep.subr.bf16.mxu0 0
    %2756 = vmatpush1.bf16.msra.mxu0 %v1972
    %2757 = vmatprep.subr.bf16.mxu0 0
    %2758 = vmatpush1.bf16.msra.mxu0 %v1973
    %2759 = vmatprep.subr.bf16.mxu0 0
    %2760 = vmatpush1.bf16.msra.mxu0 %v1974
    %2761 = vmatprep.subr.bf16.mxu0 0
    %2762 = vmatpush1.bf16.msra.mxu0 %v1975
    %2763 = vmatprep.subr.bf16.mxu0 0
    %2764 = vmatpush1.bf16.msra.mxu0 %v1976
    %2765 = vmatprep.subr.bf16.mxu0 0
    %2766 = vmatpush1.bf16.msra.mxu0 %v1977
    %2767 = vmatprep.subr.bf16.mxu0 0
    %2768 = vmatpush1.bf16.msra.mxu0 %v1978
    %2769 = vmatprep.subr.bf16.mxu0 0
    %2770 = vmatpush1.bf16.msra.mxu0 %v1979
    %2771 = vmatprep.subr.bf16.mxu0 0
    %2772 = vmatpush1.bf16.msra.mxu0 %v1980
    %2773 = vmatprep.mubr.bf16.mxu0 %v237
    %2774 = vmatmul.mubr.bf16.gmra.mrb[0].mxu0 %v236
    %v2775 = vpop.f32.mrb[0].mxu0
    %v2776 = vadd.f32 %v2736, %v2775
    %v2777 = vpop.f32.mrb[0].mxu0
    %v2778 = vpop.f32.mrb[0].mxu0
    %v2779 = vpop.f32.mrb[0].mxu0
    %2780 = vdwg.mxu0
    %2781 = vmatprep.subr.bf16.mxu0 0
    %2782 = vmatpush1.bf16.msra.mxu0 %v1981
    %2783 = vmatprep.subr.bf16.mxu0 0
    %2784 = vmatpush1.bf16.msra.mxu0 %v1982
    %2785 = vmatprep.subr.bf16.mxu0 0
    %2786 = vmatpush1.bf16.msra.mxu0 %v1983
    %2787 = vmatprep.subr.bf16.mxu0 0
    %2788 = vmatpush1.bf16.msra.mxu0 %v1984
    %2789 = vmatprep.subr.bf16.mxu0 0
    %2790 = vmatpush1.bf16.msra.mxu0 %v1985
    %2791 = vmatprep.subr.bf16.mxu0 0
    %2792 = vmatpush1.bf16.msra.mxu0 %v1986
    %2793 = vmatprep.subr.bf16.mxu0 0
    %2794 = vmatpush1.bf16.msra.mxu0 %v1987
    %2795 = vmatprep.subr.bf16.mxu0 0
    %2796 = vmatpush1.bf16.msra.mxu0 %v1988
    %2797 = vmatprep.subr.bf16.mxu0 0
    %2798 = vmatpush1.bf16.msra.mxu0 %v1989
    %2799 = vmatprep.subr.bf16.mxu0 0
    %2800 = vmatpush1.bf16.msra.mxu0 %v1990
    %2801 = vmatprep.subr.bf16.mxu0 0
    %2802 = vmatpush1.bf16.msra.mxu0 %v1991
    %2803 = vmatprep.subr.bf16.mxu0 0
    %2804 = vmatpush1.bf16.msra.mxu0 %v1992
    %2805 = vmatprep.subr.bf16.mxu0 0
    %2806 = vmatpush1.bf16.msra.mxu0 %v1993
    %2807 = vmatprep.subr.bf16.mxu0 0
    %2808 = vmatpush1.bf16.msra.mxu0 %v1994
    %2809 = vmatprep.subr.bf16.mxu0 0
    %2810 = vmatpush1.bf16.msra.mxu0 %v1995
    %2811 = vmatprep.subr.bf16.mxu0 0
    %2812 = vmatpush1.bf16.msra.mxu0 %v1996
    %2813 = vmatprep.mubr.bf16.mxu0 %v239
    %2814 = vmatmul.mubr.bf16.gmra.mrb[0].mxu0 %v238
    %v2815 = vpop.f32.mrb[0].mxu0
    %v2816 = vadd.f32 %v2776, %v2815
    %v2817 = vpop.f32.mrb[0].mxu0
    %v2818 = vpop.f32.mrb[0].mxu0
    %v2819 = vpop.f32.mrb[0].mxu0
    %2820 = vdwg.mxu0
    %2821 = vmatprep.subr.bf16.mxu0 0
    %2822 = vmatpush1.bf16.msra.mxu0 %v1997
    %2823 = vmatprep.subr.bf16.mxu0 0
    %2824 = vmatpush1.bf16.msra.mxu0 %v1998
    %2825 = vmatprep.subr.bf16.mxu0 0
    %2826 = vmatpush1.bf16.msra.mxu0 %v1999
    %2827 = vmatprep.subr.bf16.mxu0 0
    %2828 = vmatpush1.bf16.msra.mxu0 %v2000
    %2829 = vmatprep.subr.bf16.mxu0 0
    %2830 = vmatpush1.bf16.msra.mxu0 %v2001
    %2831 = vmatprep.subr.bf16.mxu0 0
    %2832 = vmatpush1.bf16.msra.mxu0 %v2002
    %2833 = vmatprep.subr.bf16.mxu0 0
    %2834 = vmatpush1.bf16.msra.mxu0 %v2003
    %2835 = vmatprep.subr.bf16.mxu0 0
    %2836 = vmatpush1.bf16.msra.mxu0 %v2004
    %2837 = vmatprep.subr.bf16.mxu0 0
    %2838 = vmatpush1.bf16.msra.mxu0 %v2005
    %2839 = vmatprep.subr.bf16.mxu0 0
    %2840 = vmatpush1.bf16.msra.mxu0 %v2006
    %2841 = vmatprep.subr.bf16.mxu0 0
    %2842 = vmatpush1.bf16.msra.mxu0 %v2007
    %2843 = vmatprep.subr.bf16.mxu0 0
    %2844 = vmatpush1.bf16.msra.mxu0 %v2008
    %2845 = vmatprep.subr.bf16.mxu0 0
    %2846 = vmatpush1.bf16.msra.mxu0 %v2009
    %2847 = vmatprep.subr.bf16.mxu0 0
    %2848 = vmatpush1.bf16.msra.mxu0 %v2010
    %2849 = vmatprep.subr.bf16.mxu0 0
    %2850 = vmatpush1.bf16.msra.mxu0 %v2011
    %2851 = vmatprep.subr.bf16.mxu0 0
    %2852 = vmatpush1.bf16.msra.mxu0 %v2012
    %2853 = vmatprep.mubr.bf16.mxu0 %v241
    %2854 = vmatmul.mubr.bf16.gmra.mrb[0].mxu0 %v240
    %v2855 = vpop.f32.mrb[0].mxu0
    %v2856 = vadd.f32 %v2816, %v2855
    %v2857 = vpop.f32.mrb[0].mxu0
    %v2858 = vpop.f32.mrb[0].mxu0
    %v2859 = vpop.f32.mrb[0].mxu0
    %2860 = vdwg.mxu0
    %2861 = vmatprep.subr.bf16.mxu0 0
    %2862 = vmatpush1.bf16.msra.mxu0 %v2013
    %2863 = vmatprep.subr.bf16.mxu0 0
    %2864 = vmatpush1.bf16.msra.mxu0 %v2014
    %2865 = vmatprep.subr.bf16.mxu0 0
    %2866 = vmatpush1.bf16.msra.mxu0 %v2015
    %2867 = vmatprep.subr.bf16.mxu0 0
    %2868 = vmatpush1.bf16.msra.mxu0 %v2016
    %2869 = vmatprep.subr.bf16.mxu0 0
    %2870 = vmatpush1.bf16.msra.mxu0 %v2017
    %2871 = vmatprep.subr.bf16.mxu0 0
    %2872 = vmatpush1.bf16.msra.mxu0 %v2018
    %2873 = vmatprep.subr.bf16.mxu0 0
    %2874 = vmatpush1.bf16.msra.mxu0 %v2019
    %2875 = vmatprep.subr.bf16.mxu0 0
    %2876 = vmatpush1.bf16.msra.mxu0 %v2020
    %2877 = vmatprep.subr.bf16.mxu0 0
    %2878 = vmatpush1.bf16.msra.mxu0 %v2021
    %2879 = vmatprep.subr.bf16.mxu0 0
    %2880 = vmatpush1.bf16.msra.mxu0 %v2022
    %2881 = vmatprep.subr.bf16.mxu0 0
    %2882 = vmatpush1.bf16.msra.mxu0 %v2023
    %2883 = vmatprep.subr.bf16.mxu0 0
    %2884 = vmatpush1.bf16.msra.mxu0 %v2024
    %2885 = vmatprep.subr.bf16.mxu0 0
    %2886 = vmatpush1.bf16.msra.mxu0 %v2025
    %2887 = vmatprep.subr.bf16.mxu0 0
    %2888 = vmatpush1.bf16.msra.mxu0 %v2026
    %2889 = vmatprep.subr.bf16.mxu0 0
    %2890 = vmatpush1.bf16.msra.mxu0 %v2027
    %2891 = vmatprep.subr.bf16.mxu0 0
    %2892 = vmatpush1.bf16.msra.mxu0 %v2028
    %2893 = vmatprep.mubr.bf16.mxu0 %v243
    %2894 = vmatmul.mubr.bf16.gmra.mrb[0].mxu0 %v242
    %v2895 = vpop.f32.mrb[0].mxu0
    %v2896 = vadd.f32 %v2856, %v2895
    %v2897 = vpop.f32.mrb[0].mxu0
    %v2898 = vpop.f32.mrb[0].mxu0
    %v2899 = vpop.f32.mrb[0].mxu0
    %2900 = vdwg.mxu0
    %2901 = vmatprep.subr.bf16.mxu0 0
    %2902 = vmatpush1.bf16.msra.mxu0 %v2029
    %2903 = vmatprep.subr.bf16.mxu0 0
    %2904 = vmatpush1.bf16.msra.mxu0 %v2030
    %2905 = vmatprep.subr.bf16.mxu0 0
    %2906 = vmatpush1.bf16.msra.mxu0 %v2031
    %2907 = vmatprep.subr.bf16.mxu0 0
    %2908 = vmatpush1.bf16.msra.mxu0 %v2032
    %2909 = vmatprep.subr.bf16.mxu0 0
    %2910 = vmatpush1.bf16.msra.mxu0 %v2033
    %2911 = vmatprep.subr.bf16.mxu0 0
    %2912 = vmatpush1.bf16.msra.mxu0 %v2034
    %2913 = vmatprep.subr.bf16.mxu0 0
    %2914 = vmatpush1.bf16.msra.mxu0 %v2035
    %2915 = vmatprep.subr.bf16.mxu0 0
    %2916 = vmatpush1.bf16.msra.mxu0 %v2036
    %2917 = vmatprep.subr.bf16.mxu0 0
    %2918 = vmatpush1.bf16.msra.mxu0 %v2037
    %2919 = vmatprep.subr.bf16.mxu0 0
    %2920 = vmatpush1.bf16.msra.mxu0 %v2038
    %2921 = vmatprep.subr.bf16.mxu0 0
    %2922 = vmatpush1.bf16.msra.mxu0 %v2039
    %2923 = vmatprep.subr.bf16.mxu0 0
    %2924 = vmatpush1.bf16.msra.mxu0 %v2040
    %2925 = vmatprep.subr.bf16.mxu0 0
    %2926 = vmatpush1.bf16.msra.mxu0 %v2041
    %2927 = vmatprep.subr.bf16.mxu0 0
    %2928 = vmatpush1.bf16.msra.mxu0 %v2042
    %2929 = vmatprep.subr.bf16.mxu0 0
    %2930 = vmatpush1.bf16.msra.mxu0 %v2043
    %2931 = vmatprep.subr.bf16.mxu0 0
    %2932 = vmatpush1.bf16.msra.mxu0 %v2044
    %2933 = vmatprep.mubr.bf16.mxu0 %v245
    %2934 = vmatmul.mubr.bf16.gmra.mrb[0].mxu0 %v244
    %v2935 = vpop.f32.mrb[0].mxu0
    %v2936 = vadd.f32 %v2896, %v2935
    %v2937 = vpop.f32.mrb[0].mxu0
    %v2938 = vpop.f32.mrb[0].mxu0
    %v2939 = vpop.f32.mrb[0].mxu0
    %2940 = vdwg.mxu0
    %v2941 = vmul.f32 %v2936, %v2936
    %vm2942 = vcmask 1041408
    %v2943 = vsel %vm2942, %v2941, 0.0
    %2944 = vadd.xlane.f32.xlu0 %v2943
    %v2945 = vpop.xlane.xlu0 %2944
    %v2946 = vrsqrt.pop %v2945
    %v2947 = vmul.f32 %v2936, %v2946
    %2948 = vst [vmem:[#allocation5] sm:$0x3] %v2947
    // Predicated region
    $region18: #{pool_embed_forward.1} parent=1 // pred_check
      _
    $region19: #{pool_embed_forward.1} parent=1 // pred_check_branch
      %2950 = sbr.rel (0) target = $region21
    $region20: #{pool_embed_forward.1} parent=1 // pred_region
      %s2952 = ssub.s32 32, 32
      %2953 = vsyncadd [#allocation4], %s2952
      %s2955 = sshll.u32 [#allocation5], 4
      %s2956 = int_to_ptr.vmem [resolvable:$true] %s2955
      %2958 = dma.vmem_to_hbm [thread:$0]  %s2956, 32, %s3, [#allocation4]
    $region21: #{pool_embed_forward.1} parent=1 // pred_fallthru
      _
    // Predicated region
    $region22: #{pool_embed_forward.1} parent=1 // pred_check
      _
    $region23: #{pool_embed_forward.1} parent=1 // pred_check_branch
      %2960 = sbr.rel (0) target = $region25
    $region24: #{pool_embed_forward.1} parent=1 // pred_region
      %2961 = dma.done [#allocation4], 32
    $region25: #{pool_embed_forward.1} parent=1 // pred_fallthru
      _
    %2962 = vsyncpa [#allocation3], 1
    %2963 = vsyncpa [#allocation4], 1

</llo_original>
